<compile_context>
chip_gen: v6e
topology: v6e:2x2x1
jax: 0.10.0
libtpu: 0.0.40
codegen_flags: <defaults>
</compile_context>

<pallas_src>
import functools

import jax
import jax.numpy as jnp
import numpy as np
from jax import lax
from jax.experimental import pallas as pl
from jax.experimental.pallas import tpu as pltpu

ORDER = 3      # module hard-codes order = 3 (filter kernel is specialized to it)
HIDDEN = 256   # t_modulator hidden size
HCHUNK = 32    # hidden rows processed per slab in the MLP loop


# ---------------------------------------------------------------------------
# In-kernel MLP:  1 + Linear(256,1)(ReLU(Linear(1,256)(t)))   on a (1, L) row
# ---------------------------------------------------------------------------
def _mlp_mod(t_row, p_ref, one_plus_bias2):
    # t_row: (1, L) f32.  p_ref: VMEM (HIDDEN, 3) packed [w1 | b1 | w2^T].
    L = t_row.shape[-1]
    t_b = jnp.broadcast_to(t_row, (HCHUNK, L))            # hoisted sublane broadcast
    acc8 = jnp.zeros((8, L), jnp.float32)                 # VPU partial sums
    for c in range(HIDDEN // HCHUNK):                     # 8 static iterations
        lo = c * HCHUNK
        w1 = p_ref[lo:lo + HCHUNK, 0:1]                   # (HC, 1)
        b1 = p_ref[lo:lo + HCHUNK, 1:2]                   # (HC, 1)
        w2 = p_ref[lo:lo + HCHUNK, 2:3]                   # (HC, 1)
        wh = w2 * jnp.maximum(w1 * t_b + b1, 0.0)         # (HC, L)   VPU only
        # Fold the 32-row slab into 8 sublanes with plain VPU adds (no XLU).
        acc8 = acc8 + ((wh[0:8, :] + wh[8:16, :]) + (wh[16:24, :] + wh[24:32, :]))
    # Single 8 -> 1 sublane reduce (XLU) per call.
    return jnp.sum(acc8, axis=0, keepdims=True) + one_plus_bias2   # (1, L)


# ---------------------------------------------------------------------------
# Fused kernel: mod MLP + three all-pass stages (shift expansion + thin halo)
# ---------------------------------------------------------------------------
def _fused_kernel(coef_ref, t_ref, th_ref, x_ref, xh_ref, p_ref, y_ref):
    # coef_ref: SMEM (8,) = [a0, a1, a2, b0, b1, b2, a0+b0, 1+bias2]
    # t_ref  (1, T)  th_ref (1, W)  x_ref (B, T)  xh_ref (B, W)  y_ref (B, T)
    T = x_ref.shape[-1]
    W = xh_ref.shape[-1]
    reps = T // W

    one_plus_b2 = coef_ref[7]
    m0 = _mlp_mod(t_ref[...], p_ref, one_plus_b2)          # (1, T) mod, current tile
    mh = _mlp_mod(th_ref[...], p_ref, one_plus_b2)         # (1, W) mod, halo columns

    x0 = x_ref[...]                                        # (B, T)
    xh = xh_ref[...]                                       # (B, W)

    lane = lax.broadcasted_iota(jnp.int32, (1, T), 1)
    keep = [lane < (T - k) for k in (1, 2, 3)]             # shared lane masks

    def shifted(cur, halo, k):
        # result[..., i] = global[..., tile_start + i + k],  k in [1, ORDER].
        body = pltpu.roll(cur, T - k, axis=1)              # cur[(i + k) % T]
        tail = pltpu.roll(halo, W - k, axis=1)             # halo[j] lands at lane W-k+j
        if reps > 1:                                       # replicate across lane groups
            tail = jnp.concatenate([tail] * reps, axis=1)  # 128-aligned lane concat
        return jnp.where(keep[k - 1], body, tail)

    xs = (x0, shifted(x0, xh, 1), shifted(x0, xh, 2), shifted(x0, xh, 3))
    ms = (m0, shifted(m0, mh, 1), shifted(m0, mh, 2))

    a0, a1, a2 = coef_ref[0], coef_ref[1], coef_ref[2]
    b0, b1, b2c = coef_ref[3], coef_ref[4], coef_ref[5]
    ab0 = coef_ref[6]                                      # a0 + b0 (host-folded)

    # y1[j] = m[j] * ((a0+b0) * x[j]        - b0 * x[j+1])
    # y2[j] = m[j] * (b1 * (x[j+1] - y1[j+1]) + a1 * y1[j])
    # y3[j] = m[j] * (b2 * (x[j+2] - y2[j+1]) + a2 * y2[j])
    y1 = [ms[s] * (ab0 * xs[s] - b0 * xs[s + 1]) for s in range(3)]
    y2 = [ms[s] * (b1 * (xs[s + 1] - y1[s + 1]) + a1 * y1[s]) for s in range(2)]
    y_ref[...] = m0 * (b2c * (xs[2] - y2[1]) + a2 * y2[0])


# ---------------------------------------------------------------------------
# Wrapper
# ---------------------------------------------------------------------------
def _vmem_need(b_rows, tile, halo_w):
    # Double-buffered in/out blocks + the lane-padded (256,128) params buffers.
    blocks = 2 * b_rows * tile + b_rows * halo_w + tile + halo_w
    return 2 * blocks * 4 + 2 * HIDDEN * 128 * 4


_TILE_CANDS = (4096, 3072, 2048, 1536, 1024, 768, 512, 384, 256, 128)


def _pick_tile(n, b_rows):
    if n % 128 != 0:
        return n                                   # full-extent single tile (fallback)
    budget = 40 << 20
    fits = lambda t: _vmem_need(b_rows, t, 128) <= budget
    # Prefer an even tile count >= 2 (v7x has 2 TensorCores), then any >= 2.
    for want_even in (True, False):
        for t in _TILE_CANDS:
            if n % t != 0 or n // t < 2 or not fits(t):
                continue
            if want_even and (n // t) % 2 != 0:
                continue
            return t
    return n if fits(n) else 128


@functools.partial(jax.jit, static_argnames=("tile",))
def time_dependent_allpass(x, t, a, b, w1, b1, w2, b2, *, tile=None):
    x = x.astype(jnp.float32)
    B, N = x.shape
    T = _pick_tile(N, B) if tile is None else tile
    assert N % T == 0 and T >= ORDER, "tile must divide N and be >= ORDER"
    nt = N // T

    t2 = t.reshape(1, N).astype(jnp.float32)
    params = jnp.concatenate(                      # (HIDDEN, 3) packed [w1 | b1 | w2^T]
        [w1.reshape(HIDDEN, 1), b1.reshape(HIDDEN, 1), w2.reshape(HIDDEN, 1)],
        axis=1).astype(jnp.float32)

    af = a.astype(jnp.float32)
    bf = b.astype(jnp.float32)
    coef = jnp.concatenate([af, bf, (af[0] + bf[0])[None],
                            1.0 + b2.reshape(1).astype(jnp.float32)])   # (8,)

    # Thin circular halo: first 128 columns of tile (i+1) % nt, read directly
    # from the original arrays with a second narrow BlockSpec (no extra arrays).
    if T % 128 == 0:
        W = 128
        hb = T // 128
        x_halo_spec = pl.BlockSpec((B, W), lambda i: (0, ((i + 1) % nt) * hb))
        t_halo_spec = pl.BlockSpec((1, W), lambda i: (0, ((i + 1) % nt) * hb))
    else:
        # Degenerate non-128-multiple N (single full tile): halo = whole tile.
        W = T
        x_halo_spec = pl.BlockSpec((B, T), lambda i: (0, (i + 1) % nt))
        t_halo_spec = pl.BlockSpec((1, T), lambda i: (0, (i + 1) % nt))

    mlp_cols = N + nt * W
    cost = pl.CostEstimate(
        flops=int(mlp_cols * (4 * HIDDEN + 8) + B * N * 26),
        transcendentals=0,
        bytes_accessed=int(4 * (2 * B * N + B * nt * W + N + nt * W + HIDDEN * 3)))

    vmem_need = _vmem_need(B, T, W)
    vmem_limit = None
    if vmem_need > (12 << 20):
        vmem_limit = int(min(vmem_need + (8 << 20), 64 << 20))
    cparams = pltpu.CompilerParams(dimension_semantics=("parallel",),
                                   vmem_limit_bytes=vmem_limit)

    y = pl.pallas_call(
        _fused_kernel,
        out_shape=jax.ShapeDtypeStruct((B, N), jnp.float32),
        grid=(nt,),
        in_specs=[
            pl.BlockSpec(memory_space=pltpu.MemorySpace.SMEM),   # coef (8,)
            pl.BlockSpec((1, T), lambda i: (0, i)),              # t, current tile
            t_halo_spec,                                         # t, halo window
            pl.BlockSpec((B, T), lambda i: (0, i)),              # x, current tile
            x_halo_spec,                                         # x, halo window
            pl.BlockSpec((HIDDEN, 3), lambda i: (0, 0)),         # packed MLP params
        ],
        out_specs=pl.BlockSpec((B, T), lambda i: (0, i)),
        compiler_params=cparams,
        cost_estimate=cost,
    )(coef, t2, t2, x, x, params)
    return y


def reference(x, t, a, b, w1, b1, w2, b2):
    """Pure-JAX reference mirroring the PyTorch forward exactly."""
    h = jnp.maximum(t[:, None] * w1[:, 0][None, :] + b1[None, :], 0.0)  # (N, H)
    t_norm = (h * w2[0][None, :]).sum(axis=-1) + b2[0]                  # (N,)
    mod = 1.0 + t_norm
    y = x
    for i in range(ORDER):
        a_mod = a[i] * mod
        b_mod = b[i] * mod
        y = b_mod * x + a_mod * y - b_mod * jnp.roll(y, -1, axis=-1)
        x = jnp.roll(x, -1, axis=-1)
    return y


if __name__ == "__main__":
    key = jax.random.PRNGKey(0)
    k = jax.random.split(key, 8)

    B, N = 4, 512

    # Deterministic synthetic parameters (shapes from the module __init__).
    a  = jax.random.uniform(k[0], (ORDER,), jnp.float32)                # torch.rand(3)
    b  = jax.random.uniform(k[1], (ORDER,), jnp.float32)                # torch.rand(3)
    w1 = jax.random.uniform(k[2], (HIDDEN, 1), jnp.float32, -1.0, 1.0)  # Linear(1,256).weight
    b1 = jax.random.uniform(k[3], (HIDDEN,),   jnp.float32, -1.0, 1.0)  # Linear(1,256).bias
    w2 = jax.random.uniform(k[4], (1, HIDDEN), jnp.float32, -0.0625, 0.0625)  # Linear(256,1).weight
    b2 = jax.random.uniform(k[5], (1,),        jnp.float32, -0.0625, 0.0625)  # Linear(256,1).bias

    x = jax.random.normal(k[6], (B, N), jnp.float32)
    t = jax.random.uniform(k[7], (N,), jnp.float32)

    y_ref = reference(x, t, a, b, w1, b1, w2, b2)

    # Default tiling (T=256, nt=2): exercises the narrow inter-tile circular halo.
    y_def = jax.block_until_ready(time_dependent_allpass(x, t, a, b, w1, b1, w2, b2))
    np.testing.assert_allclose(np.asarray(y_def), np.asarray(y_ref),
                               rtol=2e-4, atol=2e-4)

    # Single 512-wide tile (nt=1): the halo wraps onto the tile itself.
    y_one = jax.block_until_ready(
        time_dependent_allpass(x, t, a, b, w1, b1, w2, b2, tile=512))
    np.testing.assert_allclose(np.asarray(y_one), np.asarray(y_ref),
                               rtol=2e-4, atol=2e-4)

    print("KERNEL_OK")
</pallas_src>

<mosaic_0001>
module attributes {stable_mosaic.version = 11 : i64} {
  func.func @_fused_kernel(%arg0: i32, %arg1: memref<8xf32, #tpu.memory_space<smem>>, %arg2: memref<1x256xf32, #tpu.memory_space<vmem>>, %arg3: memref<1x128xf32, #tpu.memory_space<vmem>>, %arg4: memref<4x256xf32, #tpu.memory_space<vmem>>, %arg5: memref<4x128xf32, #tpu.memory_space<vmem>>, %arg6: memref<256x3xf32, #tpu.memory_space<vmem>>, %arg7: memref<4x256xf32, #tpu.memory_space<vmem>>) attributes {dimension_semantics = [#tpu.dimension_semantics<parallel>], iteration_bounds = array<i64: 2>, scalar_prefetch = 0 : i64, scratch_operands = 0 : i64, tpu.core_type = #tpu.core_type<tc>, window_params = [{transform_indices = @transform_0, window_bounds = array<i64: 8>}, {transform_indices = @transform_1, window_bounds = array<i64: 1, 256>}, {transform_indices = @transform_2, window_bounds = array<i64: 1, 128>}, {transform_indices = @transform_3, window_bounds = array<i64: 4, 256>}, {transform_indices = @transform_4, window_bounds = array<i64: 4, 128>}, {pipeline_mode = #tpu.pipeline_mode<synchronous>, transform_indices = @transform_5, window_bounds = array<i64: 256, 3>}, {transform_indices = @transform_6, window_bounds = array<i64: 4, 256>}]} {
    %c7 = arith.constant 7 : index
    %0 = memref.load %arg1[%c7] : memref<8xf32, #tpu.memory_space<smem>>
    %c0 = arith.constant 0 : index
    %c0_0 = arith.constant 0 : index
    %1 = vector.load %arg2[%c0, %c0_0] : memref<1x256xf32, #tpu.memory_space<vmem>>, vector<1x256xf32>
    %2 = vector.shape_cast %1 : vector<1x256xf32> to vector<1x256xf32>
    %3 = vector.broadcast %2 : vector<1x256xf32> to vector<32x256xf32>
    %cst = arith.constant 0.000000e+00 : f32
    %4 = vector.broadcast %cst : f32 to vector<8x256xf32>
    %c0_1 = arith.constant 0 : index
    %c0_2 = arith.constant 0 : index
    %5 = vector.load %arg6[%c0_1, %c0_2] : memref<256x3xf32, #tpu.memory_space<vmem>>, vector<32x1xf32>
    %c0_3 = arith.constant 0 : index
    %c1 = arith.constant 1 : index
    %6 = vector.load %arg6[%c0_3, %c1] : memref<256x3xf32, #tpu.memory_space<vmem>>, vector<32x1xf32>
    %c0_4 = arith.constant 0 : index
    %c2 = arith.constant 2 : index
    %7 = vector.load %arg6[%c0_4, %c2] : memref<256x3xf32, #tpu.memory_space<vmem>>, vector<32x1xf32>
    %8 = vector.broadcast %5 : vector<32x1xf32> to vector<32x256xf32>
    %9 = arith.mulf %8, %3 : vector<32x256xf32>
    %10 = vector.broadcast %6 : vector<32x1xf32> to vector<32x256xf32>
    %11 = arith.addf %9, %10 : vector<32x256xf32>
    %cst_5 = arith.constant 0.000000e+00 : f32
    %12 = vector.broadcast %cst_5 : f32 to vector<32x256xf32>
    %13 = arith.maximumf %11, %12 : vector<32x256xf32>
    %14 = vector.broadcast %7 : vector<32x1xf32> to vector<32x256xf32>
    %15 = arith.mulf %14, %13 : vector<32x256xf32>
    %16 = vector.extract_strided_slice %15 {offsets = [0, 0], sizes = [8, 256], strides = [1, 1]} : vector<32x256xf32> to vector<8x256xf32>
    %17 = vector.extract_strided_slice %15 {offsets = [8, 0], sizes = [8, 256], strides = [1, 1]} : vector<32x256xf32> to vector<8x256xf32>
    %18 = arith.addf %16, %17 : vector<8x256xf32>
    %19 = vector.extract_strided_slice %15 {offsets = [16, 0], sizes = [8, 256], strides = [1, 1]} : vector<32x256xf32> to vector<8x256xf32>
    %20 = vector.extract_strided_slice %15 {offsets = [24, 0], sizes = [8, 256], strides = [1, 1]} : vector<32x256xf32> to vector<8x256xf32>
    %21 = arith.addf %19, %20 : vector<8x256xf32>
    %22 = arith.addf %18, %21 : vector<8x256xf32>
    %23 = arith.addf %4, %22 : vector<8x256xf32>
    %c32 = arith.constant 32 : index
    %c0_6 = arith.constant 0 : index
    %24 = vector.load %arg6[%c32, %c0_6] : memref<256x3xf32, #tpu.memory_space<vmem>>, vector<32x1xf32>
    %c32_7 = arith.constant 32 : index
    %c1_8 = arith.constant 1 : index
    %25 = vector.load %arg6[%c32_7, %c1_8] : memref<256x3xf32, #tpu.memory_space<vmem>>, vector<32x1xf32>
    %c32_9 = arith.constant 32 : index
    %c2_10 = arith.constant 2 : index
    %26 = vector.load %arg6[%c32_9, %c2_10] : memref<256x3xf32, #tpu.memory_space<vmem>>, vector<32x1xf32>
    %27 = vector.broadcast %24 : vector<32x1xf32> to vector<32x256xf32>
    %28 = arith.mulf %27, %3 : vector<32x256xf32>
    %29 = vector.broadcast %25 : vector<32x1xf32> to vector<32x256xf32>
    %30 = arith.addf %28, %29 : vector<32x256xf32>
    %cst_11 = arith.constant 0.000000e+00 : f32
    %31 = vector.broadcast %cst_11 : f32 to vector<32x256xf32>
    %32 = arith.maximumf %30, %31 : vector<32x256xf32>
    %33 = vector.broadcast %26 : vector<32x1xf32> to vector<32x256xf32>
    %34 = arith.mulf %33, %32 : vector<32x256xf32>
    %35 = vector.extract_strided_slice %34 {offsets = [0, 0], sizes = [8, 256], strides = [1, 1]} : vector<32x256xf32> to vector<8x256xf32>
    %36 = vector.extract_strided_slice %34 {offsets = [8, 0], sizes = [8, 256], strides = [1, 1]} : vector<32x256xf32> to vector<8x256xf32>
    %37 = arith.addf %35, %36 : vector<8x256xf32>
    %38 = vector.extract_strided_slice %34 {offsets = [16, 0], sizes = [8, 256], strides = [1, 1]} : vector<32x256xf32> to vector<8x256xf32>
    %39 = vector.extract_strided_slice %34 {offsets = [24, 0], sizes = [8, 256], strides = [1, 1]} : vector<32x256xf32> to vector<8x256xf32>
    %40 = arith.addf %38, %39 : vector<8x256xf32>
    %41 = arith.addf %37, %40 : vector<8x256xf32>
    %42 = arith.addf %23, %41 : vector<8x256xf32>
    %c64 = arith.constant 64 : index
    %c0_12 = arith.constant 0 : index
    %43 = vector.load %arg6[%c64, %c0_12] : memref<256x3xf32, #tpu.memory_space<vmem>>, vector<32x1xf32>
    %c64_13 = arith.constant 64 : index
    %c1_14 = arith.constant 1 : index
    %44 = vector.load %arg6[%c64_13, %c1_14] : memref<256x3xf32, #tpu.memory_space<vmem>>, vector<32x1xf32>
    %c64_15 = arith.constant 64 : index
    %c2_16 = arith.constant 2 : index
    %45 = vector.load %arg6[%c64_15, %c2_16] : memref<256x3xf32, #tpu.memory_space<vmem>>, vector<32x1xf32>
    %46 = vector.broadcast %43 : vector<32x1xf32> to vector<32x256xf32>
    %47 = arith.mulf %46, %3 : vector<32x256xf32>
    %48 = vector.broadcast %44 : vector<32x1xf32> to vector<32x256xf32>
    %49 = arith.addf %47, %48 : vector<32x256xf32>
    %cst_17 = arith.constant 0.000000e+00 : f32
    %50 = vector.broadcast %cst_17 : f32 to vector<32x256xf32>
    %51 = arith.maximumf %49, %50 : vector<32x256xf32>
    %52 = vector.broadcast %45 : vector<32x1xf32> to vector<32x256xf32>
    %53 = arith.mulf %52, %51 : vector<32x256xf32>
    %54 = vector.extract_strided_slice %53 {offsets = [0, 0], sizes = [8, 256], strides = [1, 1]} : vector<32x256xf32> to vector<8x256xf32>
    %55 = vector.extract_strided_slice %53 {offsets = [8, 0], sizes = [8, 256], strides = [1, 1]} : vector<32x256xf32> to vector<8x256xf32>
    %56 = arith.addf %54, %55 : vector<8x256xf32>
    %57 = vector.extract_strided_slice %53 {offsets = [16, 0], sizes = [8, 256], strides = [1, 1]} : vector<32x256xf32> to vector<8x256xf32>
    %58 = vector.extract_strided_slice %53 {offsets = [24, 0], sizes = [8, 256], strides = [1, 1]} : vector<32x256xf32> to vector<8x256xf32>
    %59 = arith.addf %57, %58 : vector<8x256xf32>
    %60 = arith.addf %56, %59 : vector<8x256xf32>
    %61 = arith.addf %42, %60 : vector<8x256xf32>
    %c96 = arith.constant 96 : index
    %c0_18 = arith.constant 0 : index
    %62 = vector.load %arg6[%c96, %c0_18] : memref<256x3xf32, #tpu.memory_space<vmem>>, vector<32x1xf32>
    %c96_19 = arith.constant 96 : index
    %c1_20 = arith.constant 1 : index
    %63 = vector.load %arg6[%c96_19, %c1_20] : memref<256x3xf32, #tpu.memory_space<vmem>>, vector<32x1xf32>
    %c96_21 = arith.constant 96 : index
    %c2_22 = arith.constant 2 : index
    %64 = vector.load %arg6[%c96_21, %c2_22] : memref<256x3xf32, #tpu.memory_space<vmem>>, vector<32x1xf32>
    %65 = vector.broadcast %62 : vector<32x1xf32> to vector<32x256xf32>
    %66 = arith.mulf %65, %3 : vector<32x256xf32>
    %67 = vector.broadcast %63 : vector<32x1xf32> to vector<32x256xf32>
    %68 = arith.addf %66, %67 : vector<32x256xf32>
    %cst_23 = arith.constant 0.000000e+00 : f32
    %69 = vector.broadcast %cst_23 : f32 to vector<32x256xf32>
    %70 = arith.maximumf %68, %69 : vector<32x256xf32>
    %71 = vector.broadcast %64 : vector<32x1xf32> to vector<32x256xf32>
    %72 = arith.mulf %71, %70 : vector<32x256xf32>
    %73 = vector.extract_strided_slice %72 {offsets = [0, 0], sizes = [8, 256], strides = [1, 1]} : vector<32x256xf32> to vector<8x256xf32>
    %74 = vector.extract_strided_slice %72 {offsets = [8, 0], sizes = [8, 256], strides = [1, 1]} : vector<32x256xf32> to vector<8x256xf32>
    %75 = arith.addf %73, %74 : vector<8x256xf32>
    %76 = vector.extract_strided_slice %72 {offsets = [16, 0], sizes = [8, 256], strides = [1, 1]} : vector<32x256xf32> to vector<8x256xf32>
    %77 = vector.extract_strided_slice %72 {offsets = [24, 0], sizes = [8, 256], strides = [1, 1]} : vector<32x256xf32> to vector<8x256xf32>
    %78 = arith.addf %76, %77 : vector<8x256xf32>
    %79 = arith.addf %75, %78 : vector<8x256xf32>
    %80 = arith.addf %61, %79 : vector<8x256xf32>
    %c128 = arith.constant 128 : index
    %c0_24 = arith.constant 0 : index
    %81 = vector.load %arg6[%c128, %c0_24] : memref<256x3xf32, #tpu.memory_space<vmem>>, vector<32x1xf32>
    %c128_25 = arith.constant 128 : index
    %c1_26 = arith.constant 1 : index
    %82 = vector.load %arg6[%c128_25, %c1_26] : memref<256x3xf32, #tpu.memory_space<vmem>>, vector<32x1xf32>
    %c128_27 = arith.constant 128 : index
    %c2_28 = arith.constant 2 : index
    %83 = vector.load %arg6[%c128_27, %c2_28] : memref<256x3xf32, #tpu.memory_space<vmem>>, vector<32x1xf32>
    %84 = vector.broadcast %81 : vector<32x1xf32> to vector<32x256xf32>
    %85 = arith.mulf %84, %3 : vector<32x256xf32>
    %86 = vector.broadcast %82 : vector<32x1xf32> to vector<32x256xf32>
    %87 = arith.addf %85, %86 : vector<32x256xf32>
    %cst_29 = arith.constant 0.000000e+00 : f32
    %88 = vector.broadcast %cst_29 : f32 to vector<32x256xf32>
    %89 = arith.maximumf %87, %88 : vector<32x256xf32>
    %90 = vector.broadcast %83 : vector<32x1xf32> to vector<32x256xf32>
    %91 = arith.mulf %90, %89 : vector<32x256xf32>
    %92 = vector.extract_strided_slice %91 {offsets = [0, 0], sizes = [8, 256], strides = [1, 1]} : vector<32x256xf32> to vector<8x256xf32>
    %93 = vector.extract_strided_slice %91 {offsets = [8, 0], sizes = [8, 256], strides = [1, 1]} : vector<32x256xf32> to vector<8x256xf32>
    %94 = arith.addf %92, %93 : vector<8x256xf32>
    %95 = vector.extract_strided_slice %91 {offsets = [16, 0], sizes = [8, 256], strides = [1, 1]} : vector<32x256xf32> to vector<8x256xf32>
    %96 = vector.extract_strided_slice %91 {offsets = [24, 0], sizes = [8, 256], strides = [1, 1]} : vector<32x256xf32> to vector<8x256xf32>
    %97 = arith.addf %95, %96 : vector<8x256xf32>
    %98 = arith.addf %94, %97 : vector<8x256xf32>
    %99 = arith.addf %80, %98 : vector<8x256xf32>
    %c160 = arith.constant 160 : index
    %c0_30 = arith.constant 0 : index
    %100 = vector.load %arg6[%c160, %c0_30] : memref<256x3xf32, #tpu.memory_space<vmem>>, vector<32x1xf32>
    %c160_31 = arith.constant 160 : index
    %c1_32 = arith.constant 1 : index
    %101 = vector.load %arg6[%c160_31, %c1_32] : memref<256x3xf32, #tpu.memory_space<vmem>>, vector<32x1xf32>
    %c160_33 = arith.constant 160 : index
    %c2_34 = arith.constant 2 : index
    %102 = vector.load %arg6[%c160_33, %c2_34] : memref<256x3xf32, #tpu.memory_space<vmem>>, vector<32x1xf32>
    %103 = vector.broadcast %100 : vector<32x1xf32> to vector<32x256xf32>
    %104 = arith.mulf %103, %3 : vector<32x256xf32>
    %105 = vector.broadcast %101 : vector<32x1xf32> to vector<32x256xf32>
    %106 = arith.addf %104, %105 : vector<32x256xf32>
    %cst_35 = arith.constant 0.000000e+00 : f32
    %107 = vector.broadcast %cst_35 : f32 to vector<32x256xf32>
    %108 = arith.maximumf %106, %107 : vector<32x256xf32>
    %109 = vector.broadcast %102 : vector<32x1xf32> to vector<32x256xf32>
    %110 = arith.mulf %109, %108 : vector<32x256xf32>
    %111 = vector.extract_strided_slice %110 {offsets = [0, 0], sizes = [8, 256], strides = [1, 1]} : vector<32x256xf32> to vector<8x256xf32>
    %112 = vector.extract_strided_slice %110 {offsets = [8, 0], sizes = [8, 256], strides = [1, 1]} : vector<32x256xf32> to vector<8x256xf32>
    %113 = arith.addf %111, %112 : vector<8x256xf32>
    %114 = vector.extract_strided_slice %110 {offsets = [16, 0], sizes = [8, 256], strides = [1, 1]} : vector<32x256xf32> to vector<8x256xf32>
    %115 = vector.extract_strided_slice %110 {offsets = [24, 0], sizes = [8, 256], strides = [1, 1]} : vector<32x256xf32> to vector<8x256xf32>
    %116 = arith.addf %114, %115 : vector<8x256xf32>
    %117 = arith.addf %113, %116 : vector<8x256xf32>
    %118 = arith.addf %99, %117 : vector<8x256xf32>
    %c192 = arith.constant 192 : index
    %c0_36 = arith.constant 0 : index
    %119 = vector.load %arg6[%c192, %c0_36] : memref<256x3xf32, #tpu.memory_space<vmem>>, vector<32x1xf32>
    %c192_37 = arith.constant 192 : index
    %c1_38 = arith.constant 1 : index
    %120 = vector.load %arg6[%c192_37, %c1_38] : memref<256x3xf32, #tpu.memory_space<vmem>>, vector<32x1xf32>
    %c192_39 = arith.constant 192 : index
    %c2_40 = arith.constant 2 : index
    %121 = vector.load %arg6[%c192_39, %c2_40] : memref<256x3xf32, #tpu.memory_space<vmem>>, vector<32x1xf32>
    %122 = vector.broadcast %119 : vector<32x1xf32> to vector<32x256xf32>
    %123 = arith.mulf %122, %3 : vector<32x256xf32>
    %124 = vector.broadcast %120 : vector<32x1xf32> to vector<32x256xf32>
    %125 = arith.addf %123, %124 : vector<32x256xf32>
    %cst_41 = arith.constant 0.000000e+00 : f32
    %126 = vector.broadcast %cst_41 : f32 to vector<32x256xf32>
    %127 = arith.maximumf %125, %126 : vector<32x256xf32>
    %128 = vector.broadcast %121 : vector<32x1xf32> to vector<32x256xf32>
    %129 = arith.mulf %128, %127 : vector<32x256xf32>
    %130 = vector.extract_strided_slice %129 {offsets = [0, 0], sizes = [8, 256], strides = [1, 1]} : vector<32x256xf32> to vector<8x256xf32>
    %131 = vector.extract_strided_slice %129 {offsets = [8, 0], sizes = [8, 256], strides = [1, 1]} : vector<32x256xf32> to vector<8x256xf32>
    %132 = arith.addf %130, %131 : vector<8x256xf32>
    %133 = vector.extract_strided_slice %129 {offsets = [16, 0], sizes = [8, 256], strides = [1, 1]} : vector<32x256xf32> to vector<8x256xf32>
    %134 = vector.extract_strided_slice %129 {offsets = [24, 0], sizes = [8, 256], strides = [1, 1]} : vector<32x256xf32> to vector<8x256xf32>
    %135 = arith.addf %133, %134 : vector<8x256xf32>
    %136 = arith.addf %132, %135 : vector<8x256xf32>
    %137 = arith.addf %118, %136 : vector<8x256xf32>
    %c224 = arith.constant 224 : index
    %c0_42 = arith.constant 0 : index
    %138 = vector.load %arg6[%c224, %c0_42] : memref<256x3xf32, #tpu.memory_space<vmem>>, vector<32x1xf32>
    %c224_43 = arith.constant 224 : index
    %c1_44 = arith.constant 1 : index
    %139 = vector.load %arg6[%c224_43, %c1_44] : memref<256x3xf32, #tpu.memory_space<vmem>>, vector<32x1xf32>
    %c224_45 = arith.constant 224 : index
    %c2_46 = arith.constant 2 : index
    %140 = vector.load %arg6[%c224_45, %c2_46] : memref<256x3xf32, #tpu.memory_space<vmem>>, vector<32x1xf32>
    %141 = vector.broadcast %138 : vector<32x1xf32> to vector<32x256xf32>
    %142 = arith.mulf %141, %3 : vector<32x256xf32>
    %143 = vector.broadcast %139 : vector<32x1xf32> to vector<32x256xf32>
    %144 = arith.addf %142, %143 : vector<32x256xf32>
    %cst_47 = arith.constant 0.000000e+00 : f32
    %145 = vector.broadcast %cst_47 : f32 to vector<32x256xf32>
    %146 = arith.maximumf %144, %145 : vector<32x256xf32>
    %147 = vector.broadcast %140 : vector<32x1xf32> to vector<32x256xf32>
    %148 = arith.mulf %147, %146 : vector<32x256xf32>
    %149 = vector.extract_strided_slice %148 {offsets = [0, 0], sizes = [8, 256], strides = [1, 1]} : vector<32x256xf32> to vector<8x256xf32>
    %150 = vector.extract_strided_slice %148 {offsets = [8, 0], sizes = [8, 256], strides = [1, 1]} : vector<32x256xf32> to vector<8x256xf32>
    %151 = arith.addf %149, %150 : vector<8x256xf32>
    %152 = vector.extract_strided_slice %148 {offsets = [16, 0], sizes = [8, 256], strides = [1, 1]} : vector<32x256xf32> to vector<8x256xf32>
    %153 = vector.extract_strided_slice %148 {offsets = [24, 0], sizes = [8, 256], strides = [1, 1]} : vector<32x256xf32> to vector<8x256xf32>
    %154 = arith.addf %152, %153 : vector<8x256xf32>
    %155 = arith.addf %151, %154 : vector<8x256xf32>
    %156 = arith.addf %137, %155 : vector<8x256xf32>
    %cst_48 = arith.constant dense<0.000000e+00> : vector<256xf32>
    %157 = vector.multi_reduction <add>, %156, %cst_48 [0] : vector<8x256xf32> to vector<256xf32>
    %158 = vector.shape_cast %157 : vector<256xf32> to vector<1x256xf32>
    %159 = vector.broadcast %0 : f32 to vector<1x256xf32>
    %160 = arith.addf %158, %159 : vector<1x256xf32>
    %c0_49 = arith.constant 0 : index
    %c0_50 = arith.constant 0 : index
    %161 = vector.load %arg3[%c0_49, %c0_50] : memref<1x128xf32, #tpu.memory_space<vmem>>, vector<1x128xf32>
    %162 = vector.shape_cast %161 : vector<1x128xf32> to vector<1x128xf32>
    %163 = vector.broadcast %162 : vector<1x128xf32> to vector<32x128xf32>
    %cst_51 = arith.constant 0.000000e+00 : f32
    %164 = vector.broadcast %cst_51 : f32 to vector<8x128xf32>
    %c0_52 = arith.constant 0 : index
    %c0_53 = arith.constant 0 : index
    %165 = vector.load %arg6[%c0_52, %c0_53] : memref<256x3xf32, #tpu.memory_space<vmem>>, vector<32x1xf32>
    %c0_54 = arith.constant 0 : index
    %c1_55 = arith.constant 1 : index
    %166 = vector.load %arg6[%c0_54, %c1_55] : memref<256x3xf32, #tpu.memory_space<vmem>>, vector<32x1xf32>
    %c0_56 = arith.constant 0 : index
    %c2_57 = arith.constant 2 : index
    %167 = vector.load %arg6[%c0_56, %c2_57] : memref<256x3xf32, #tpu.memory_space<vmem>>, vector<32x1xf32>
    %168 = vector.broadcast %165 : vector<32x1xf32> to vector<32x128xf32>
    %169 = arith.mulf %168, %163 : vector<32x128xf32>
    %170 = vector.broadcast %166 : vector<32x1xf32> to vector<32x128xf32>
    %171 = arith.addf %169, %170 : vector<32x128xf32>
    %cst_58 = arith.constant 0.000000e+00 : f32
    %172 = vector.broadcast %cst_58 : f32 to vector<32x128xf32>
    %173 = arith.maximumf %171, %172 : vector<32x128xf32>
    %174 = vector.broadcast %167 : vector<32x1xf32> to vector<32x128xf32>
    %175 = arith.mulf %174, %173 : vector<32x128xf32>
    %176 = vector.extract_strided_slice %175 {offsets = [0, 0], sizes = [8, 128], strides = [1, 1]} : vector<32x128xf32> to vector<8x128xf32>
    %177 = vector.extract_strided_slice %175 {offsets = [8, 0], sizes = [8, 128], strides = [1, 1]} : vector<32x128xf32> to vector<8x128xf32>
    %178 = arith.addf %176, %177 : vector<8x128xf32>
    %179 = vector.extract_strided_slice %175 {offsets = [16, 0], sizes = [8, 128], strides = [1, 1]} : vector<32x128xf32> to vector<8x128xf32>
    %180 = vector.extract_strided_slice %175 {offsets = [24, 0], sizes = [8, 128], strides = [1, 1]} : vector<32x128xf32> to vector<8x128xf32>
    %181 = arith.addf %179, %180 : vector<8x128xf32>
    %182 = arith.addf %178, %181 : vector<8x128xf32>
    %183 = arith.addf %164, %182 : vector<8x128xf32>
    %c32_59 = arith.constant 32 : index
    %c0_60 = arith.constant 0 : index
    %184 = vector.load %arg6[%c32_59, %c0_60] : memref<256x3xf32, #tpu.memory_space<vmem>>, vector<32x1xf32>
    %c32_61 = arith.constant 32 : index
    %c1_62 = arith.constant 1 : index
    %185 = vector.load %arg6[%c32_61, %c1_62] : memref<256x3xf32, #tpu.memory_space<vmem>>, vector<32x1xf32>
    %c32_63 = arith.constant 32 : index
    %c2_64 = arith.constant 2 : index
    %186 = vector.load %arg6[%c32_63, %c2_64] : memref<256x3xf32, #tpu.memory_space<vmem>>, vector<32x1xf32>
    %187 = vector.broadcast %184 : vector<32x1xf32> to vector<32x128xf32>
    %188 = arith.mulf %187, %163 : vector<32x128xf32>
    %189 = vector.broadcast %185 : vector<32x1xf32> to vector<32x128xf32>
    %190 = arith.addf %188, %189 : vector<32x128xf32>
    %cst_65 = arith.constant 0.000000e+00 : f32
    %191 = vector.broadcast %cst_65 : f32 to vector<32x128xf32>
    %192 = arith.maximumf %190, %191 : vector<32x128xf32>
    %193 = vector.broadcast %186 : vector<32x1xf32> to vector<32x128xf32>
    %194 = arith.mulf %193, %192 : vector<32x128xf32>
    %195 = vector.extract_strided_slice %194 {offsets = [0, 0], sizes = [8, 128], strides = [1, 1]} : vector<32x128xf32> to vector<8x128xf32>
    %196 = vector.extract_strided_slice %194 {offsets = [8, 0], sizes = [8, 128], strides = [1, 1]} : vector<32x128xf32> to vector<8x128xf32>
    %197 = arith.addf %195, %196 : vector<8x128xf32>
    %198 = vector.extract_strided_slice %194 {offsets = [16, 0], sizes = [8, 128], strides = [1, 1]} : vector<32x128xf32> to vector<8x128xf32>
    %199 = vector.extract_strided_slice %194 {offsets = [24, 0], sizes = [8, 128], strides = [1, 1]} : vector<32x128xf32> to vector<8x128xf32>
    %200 = arith.addf %198, %199 : vector<8x128xf32>
    %201 = arith.addf %197, %200 : vector<8x128xf32>
    %202 = arith.addf %183, %201 : vector<8x128xf32>
    %c64_66 = arith.constant 64 : index
    %c0_67 = arith.constant 0 : index
    %203 = vector.load %arg6[%c64_66, %c0_67] : memref<256x3xf32, #tpu.memory_space<vmem>>, vector<32x1xf32>
    %c64_68 = arith.constant 64 : index
    %c1_69 = arith.constant 1 : index
    %204 = vector.load %arg6[%c64_68, %c1_69] : memref<256x3xf32, #tpu.memory_space<vmem>>, vector<32x1xf32>
    %c64_70 = arith.constant 64 : index
    %c2_71 = arith.constant 2 : index
    %205 = vector.load %arg6[%c64_70, %c2_71] : memref<256x3xf32, #tpu.memory_space<vmem>>, vector<32x1xf32>
    %206 = vector.broadcast %203 : vector<32x1xf32> to vector<32x128xf32>
    %207 = arith.mulf %206, %163 : vector<32x128xf32>
    %208 = vector.broadcast %204 : vector<32x1xf32> to vector<32x128xf32>
    %209 = arith.addf %207, %208 : vector<32x128xf32>
    %cst_72 = arith.constant 0.000000e+00 : f32
    %210 = vector.broadcast %cst_72 : f32 to vector<32x128xf32>
    %211 = arith.maximumf %209, %210 : vector<32x128xf32>
    %212 = vector.broadcast %205 : vector<32x1xf32> to vector<32x128xf32>
    %213 = arith.mulf %212, %211 : vector<32x128xf32>
    %214 = vector.extract_strided_slice %213 {offsets = [0, 0], sizes = [8, 128], strides = [1, 1]} : vector<32x128xf32> to vector<8x128xf32>
    %215 = vector.extract_strided_slice %213 {offsets = [8, 0], sizes = [8, 128], strides = [1, 1]} : vector<32x128xf32> to vector<8x128xf32>
    %216 = arith.addf %214, %215 : vector<8x128xf32>
    %217 = vector.extract_strided_slice %213 {offsets = [16, 0], sizes = [8, 128], strides = [1, 1]} : vector<32x128xf32> to vector<8x128xf32>
    %218 = vector.extract_strided_slice %213 {offsets = [24, 0], sizes = [8, 128], strides = [1, 1]} : vector<32x128xf32> to vector<8x128xf32>
    %219 = arith.addf %217, %218 : vector<8x128xf32>
    %220 = arith.addf %216, %219 : vector<8x128xf32>
    %221 = arith.addf %202, %220 : vector<8x128xf32>
    %c96_73 = arith.constant 96 : index
    %c0_74 = arith.constant 0 : index
    %222 = vector.load %arg6[%c96_73, %c0_74] : memref<256x3xf32, #tpu.memory_space<vmem>>, vector<32x1xf32>
    %c96_75 = arith.constant 96 : index
    %c1_76 = arith.constant 1 : index
    %223 = vector.load %arg6[%c96_75, %c1_76] : memref<256x3xf32, #tpu.memory_space<vmem>>, vector<32x1xf32>
    %c96_77 = arith.constant 96 : index
    %c2_78 = arith.constant 2 : index
    %224 = vector.load %arg6[%c96_77, %c2_78] : memref<256x3xf32, #tpu.memory_space<vmem>>, vector<32x1xf32>
    %225 = vector.broadcast %222 : vector<32x1xf32> to vector<32x128xf32>
    %226 = arith.mulf %225, %163 : vector<32x128xf32>
    %227 = vector.broadcast %223 : vector<32x1xf32> to vector<32x128xf32>
    %228 = arith.addf %226, %227 : vector<32x128xf32>
    %cst_79 = arith.constant 0.000000e+00 : f32
    %229 = vector.broadcast %cst_79 : f32 to vector<32x128xf32>
    %230 = arith.maximumf %228, %229 : vector<32x128xf32>
    %231 = vector.broadcast %224 : vector<32x1xf32> to vector<32x128xf32>
    %232 = arith.mulf %231, %230 : vector<32x128xf32>
    %233 = vector.extract_strided_slice %232 {offsets = [0, 0], sizes = [8, 128], strides = [1, 1]} : vector<32x128xf32> to vector<8x128xf32>
    %234 = vector.extract_strided_slice %232 {offsets = [8, 0], sizes = [8, 128], strides = [1, 1]} : vector<32x128xf32> to vector<8x128xf32>
    %235 = arith.addf %233, %234 : vector<8x128xf32>
    %236 = vector.extract_strided_slice %232 {offsets = [16, 0], sizes = [8, 128], strides = [1, 1]} : vector<32x128xf32> to vector<8x128xf32>
    %237 = vector.extract_strided_slice %232 {offsets = [24, 0], sizes = [8, 128], strides = [1, 1]} : vector<32x128xf32> to vector<8x128xf32>
    %238 = arith.addf %236, %237 : vector<8x128xf32>
    %239 = arith.addf %235, %238 : vector<8x128xf32>
    %240 = arith.addf %221, %239 : vector<8x128xf32>
    %c128_80 = arith.constant 128 : index
    %c0_81 = arith.constant 0 : index
    %241 = vector.load %arg6[%c128_80, %c0_81] : memref<256x3xf32, #tpu.memory_space<vmem>>, vector<32x1xf32>
    %c128_82 = arith.constant 128 : index
    %c1_83 = arith.constant 1 : index
    %242 = vector.load %arg6[%c128_82, %c1_83] : memref<256x3xf32, #tpu.memory_space<vmem>>, vector<32x1xf32>
    %c128_84 = arith.constant 128 : index
    %c2_85 = arith.constant 2 : index
    %243 = vector.load %arg6[%c128_84, %c2_85] : memref<256x3xf32, #tpu.memory_space<vmem>>, vector<32x1xf32>
    %244 = vector.broadcast %241 : vector<32x1xf32> to vector<32x128xf32>
    %245 = arith.mulf %244, %163 : vector<32x128xf32>
    %246 = vector.broadcast %242 : vector<32x1xf32> to vector<32x128xf32>
    %247 = arith.addf %245, %246 : vector<32x128xf32>
    %cst_86 = arith.constant 0.000000e+00 : f32
    %248 = vector.broadcast %cst_86 : f32 to vector<32x128xf32>
    %249 = arith.maximumf %247, %248 : vector<32x128xf32>
    %250 = vector.broadcast %243 : vector<32x1xf32> to vector<32x128xf32>
    %251 = arith.mulf %250, %249 : vector<32x128xf32>
    %252 = vector.extract_strided_slice %251 {offsets = [0, 0], sizes = [8, 128], strides = [1, 1]} : vector<32x128xf32> to vector<8x128xf32>
    %253 = vector.extract_strided_slice %251 {offsets = [8, 0], sizes = [8, 128], strides = [1, 1]} : vector<32x128xf32> to vector<8x128xf32>
    %254 = arith.addf %252, %253 : vector<8x128xf32>
    %255 = vector.extract_strided_slice %251 {offsets = [16, 0], sizes = [8, 128], strides = [1, 1]} : vector<32x128xf32> to vector<8x128xf32>
    %256 = vector.extract_strided_slice %251 {offsets = [24, 0], sizes = [8, 128], strides = [1, 1]} : vector<32x128xf32> to vector<8x128xf32>
    %257 = arith.addf %255, %256 : vector<8x128xf32>
    %258 = arith.addf %254, %257 : vector<8x128xf32>
    %259 = arith.addf %240, %258 : vector<8x128xf32>
    %c160_87 = arith.constant 160 : index
    %c0_88 = arith.constant 0 : index
    %260 = vector.load %arg6[%c160_87, %c0_88] : memref<256x3xf32, #tpu.memory_space<vmem>>, vector<32x1xf32>
    %c160_89 = arith.constant 160 : index
    %c1_90 = arith.constant 1 : index
    %261 = vector.load %arg6[%c160_89, %c1_90] : memref<256x3xf32, #tpu.memory_space<vmem>>, vector<32x1xf32>
    %c160_91 = arith.constant 160 : index
    %c2_92 = arith.constant 2 : index
    %262 = vector.load %arg6[%c160_91, %c2_92] : memref<256x3xf32, #tpu.memory_space<vmem>>, vector<32x1xf32>
    %263 = vector.broadcast %260 : vector<32x1xf32> to vector<32x128xf32>
    %264 = arith.mulf %263, %163 : vector<32x128xf32>
    %265 = vector.broadcast %261 : vector<32x1xf32> to vector<32x128xf32>
    %266 = arith.addf %264, %265 : vector<32x128xf32>
    %cst_93 = arith.constant 0.000000e+00 : f32
    %267 = vector.broadcast %cst_93 : f32 to vector<32x128xf32>
    %268 = arith.maximumf %266, %267 : vector<32x128xf32>
    %269 = vector.broadcast %262 : vector<32x1xf32> to vector<32x128xf32>
    %270 = arith.mulf %269, %268 : vector<32x128xf32>
    %271 = vector.extract_strided_slice %270 {offsets = [0, 0], sizes = [8, 128], strides = [1, 1]} : vector<32x128xf32> to vector<8x128xf32>
    %272 = vector.extract_strided_slice %270 {offsets = [8, 0], sizes = [8, 128], strides = [1, 1]} : vector<32x128xf32> to vector<8x128xf32>
    %273 = arith.addf %271, %272 : vector<8x128xf32>
    %274 = vector.extract_strided_slice %270 {offsets = [16, 0], sizes = [8, 128], strides = [1, 1]} : vector<32x128xf32> to vector<8x128xf32>
    %275 = vector.extract_strided_slice %270 {offsets = [24, 0], sizes = [8, 128], strides = [1, 1]} : vector<32x128xf32> to vector<8x128xf32>
    %276 = arith.addf %274, %275 : vector<8x128xf32>
    %277 = arith.addf %273, %276 : vector<8x128xf32>
    %278 = arith.addf %259, %277 : vector<8x128xf32>
    %c192_94 = arith.constant 192 : index
    %c0_95 = arith.constant 0 : index
    %279 = vector.load %arg6[%c192_94, %c0_95] : memref<256x3xf32, #tpu.memory_space<vmem>>, vector<32x1xf32>
    %c192_96 = arith.constant 192 : index
    %c1_97 = arith.constant 1 : index
    %280 = vector.load %arg6[%c192_96, %c1_97] : memref<256x3xf32, #tpu.memory_space<vmem>>, vector<32x1xf32>
    %c192_98 = arith.constant 192 : index
    %c2_99 = arith.constant 2 : index
    %281 = vector.load %arg6[%c192_98, %c2_99] : memref<256x3xf32, #tpu.memory_space<vmem>>, vector<32x1xf32>
    %282 = vector.broadcast %279 : vector<32x1xf32> to vector<32x128xf32>
    %283 = arith.mulf %282, %163 : vector<32x128xf32>
    %284 = vector.broadcast %280 : vector<32x1xf32> to vector<32x128xf32>
    %285 = arith.addf %283, %284 : vector<32x128xf32>
    %cst_100 = arith.constant 0.000000e+00 : f32
    %286 = vector.broadcast %cst_100 : f32 to vector<32x128xf32>
    %287 = arith.maximumf %285, %286 : vector<32x128xf32>
    %288 = vector.broadcast %281 : vector<32x1xf32> to vector<32x128xf32>
    %289 = arith.mulf %288, %287 : vector<32x128xf32>
    %290 = vector.extract_strided_slice %289 {offsets = [0, 0], sizes = [8, 128], strides = [1, 1]} : vector<32x128xf32> to vector<8x128xf32>
    %291 = vector.extract_strided_slice %289 {offsets = [8, 0], sizes = [8, 128], strides = [1, 1]} : vector<32x128xf32> to vector<8x128xf32>
    %292 = arith.addf %290, %291 : vector<8x128xf32>
    %293 = vector.extract_strided_slice %289 {offsets = [16, 0], sizes = [8, 128], strides = [1, 1]} : vector<32x128xf32> to vector<8x128xf32>
    %294 = vector.extract_strided_slice %289 {offsets = [24, 0], sizes = [8, 128], strides = [1, 1]} : vector<32x128xf32> to vector<8x128xf32>
    %295 = arith.addf %293, %294 : vector<8x128xf32>
    %296 = arith.addf %292, %295 : vector<8x128xf32>
    %297 = arith.addf %278, %296 : vector<8x128xf32>
    %c224_101 = arith.constant 224 : index
    %c0_102 = arith.constant 0 : index
    %298 = vector.load %arg6[%c224_101, %c0_102] : memref<256x3xf32, #tpu.memory_space<vmem>>, vector<32x1xf32>
    %c224_103 = arith.constant 224 : index
    %c1_104 = arith.constant 1 : index
    %299 = vector.load %arg6[%c224_103, %c1_104] : memref<256x3xf32, #tpu.memory_space<vmem>>, vector<32x1xf32>
    %c224_105 = arith.constant 224 : index
    %c2_106 = arith.constant 2 : index
    %300 = vector.load %arg6[%c224_105, %c2_106] : memref<256x3xf32, #tpu.memory_space<vmem>>, vector<32x1xf32>
    %301 = vector.broadcast %298 : vector<32x1xf32> to vector<32x128xf32>
    %302 = arith.mulf %301, %163 : vector<32x128xf32>
    %303 = vector.broadcast %299 : vector<32x1xf32> to vector<32x128xf32>
    %304 = arith.addf %302, %303 : vector<32x128xf32>
    %cst_107 = arith.constant 0.000000e+00 : f32
    %305 = vector.broadcast %cst_107 : f32 to vector<32x128xf32>
    %306 = arith.maximumf %304, %305 : vector<32x128xf32>
    %307 = vector.broadcast %300 : vector<32x1xf32> to vector<32x128xf32>
    %308 = arith.mulf %307, %306 : vector<32x128xf32>
    %309 = vector.extract_strided_slice %308 {offsets = [0, 0], sizes = [8, 128], strides = [1, 1]} : vector<32x128xf32> to vector<8x128xf32>
    %310 = vector.extract_strided_slice %308 {offsets = [8, 0], sizes = [8, 128], strides = [1, 1]} : vector<32x128xf32> to vector<8x128xf32>
    %311 = arith.addf %309, %310 : vector<8x128xf32>
    %312 = vector.extract_strided_slice %308 {offsets = [16, 0], sizes = [8, 128], strides = [1, 1]} : vector<32x128xf32> to vector<8x128xf32>
    %313 = vector.extract_strided_slice %308 {offsets = [24, 0], sizes = [8, 128], strides = [1, 1]} : vector<32x128xf32> to vector<8x128xf32>
    %314 = arith.addf %312, %313 : vector<8x128xf32>
    %315 = arith.addf %311, %314 : vector<8x128xf32>
    %316 = arith.addf %297, %315 : vector<8x128xf32>
    %cst_108 = arith.constant dense<0.000000e+00> : vector<128xf32>
    %317 = vector.multi_reduction <add>, %316, %cst_108 [0] : vector<8x128xf32> to vector<128xf32>
    %318 = vector.shape_cast %317 : vector<128xf32> to vector<1x128xf32>
    %319 = vector.broadcast %0 : f32 to vector<1x128xf32>
    %320 = arith.addf %318, %319 : vector<1x128xf32>
    %c0_109 = arith.constant 0 : index
    %c0_110 = arith.constant 0 : index
    %321 = vector.load %arg4[%c0_109, %c0_110] : memref<4x256xf32, #tpu.memory_space<vmem>>, vector<4x256xf32>
    %c0_111 = arith.constant 0 : index
    %c0_112 = arith.constant 0 : index
    %322 = vector.load %arg5[%c0_111, %c0_112] : memref<4x128xf32, #tpu.memory_space<vmem>>, vector<4x128xf32>
    %323 = tpu.iota {dimensions = array<i32: 1>} : vector<1x256xi32>
    %c255_i32 = arith.constant 255 : i32
    %324 = vector.broadcast %c255_i32 : i32 to vector<1x256xi32>
    %325 = arith.cmpi slt, %323, %324 : vector<1x256xi32>
    %c254_i32 = arith.constant 254 : i32
    %326 = vector.broadcast %c254_i32 : i32 to vector<1x256xi32>
    %327 = arith.cmpi slt, %323, %326 : vector<1x256xi32>
    %c253_i32 = arith.constant 253 : i32
    %328 = vector.broadcast %c253_i32 : i32 to vector<1x256xi32>
    %329 = arith.cmpi slt, %323, %328 : vector<1x256xi32>
    %c255_i32_113 = arith.constant 255 : i32
    %330 = tpu.dynamic_rotate %321 by %c255_i32_113 dim 1 : vector<4x256xf32>, i32 -> vector<4x256xf32>
    %c127_i32 = arith.constant 127 : i32
    %331 = tpu.dynamic_rotate %322 by %c127_i32 dim 1 : vector<4x128xf32>, i32 -> vector<4x128xf32>
    %332 = tpu.concatenate %331, %331 in 1 : vector<4x128xf32>, vector<4x128xf32> -> vector<4x256xf32>
    %333 = vector.shape_cast %325 : vector<1x256xi1> to vector<1x256xi1>
    %334 = vector.broadcast %333 : vector<1x256xi1> to vector<4x256xi1>
    %335 = arith.select %334, %330, %332 : vector<4x256xi1>, vector<4x256xf32>
    %c254_i32_114 = arith.constant 254 : i32
    %336 = tpu.dynamic_rotate %321 by %c254_i32_114 dim 1 : vector<4x256xf32>, i32 -> vector<4x256xf32>
    %c126_i32 = arith.constant 126 : i32
    %337 = tpu.dynamic_rotate %322 by %c126_i32 dim 1 : vector<4x128xf32>, i32 -> vector<4x128xf32>
    %338 = tpu.concatenate %337, %337 in 1 : vector<4x128xf32>, vector<4x128xf32> -> vector<4x256xf32>
    %339 = vector.shape_cast %327 : vector<1x256xi1> to vector<1x256xi1>
    %340 = vector.broadcast %339 : vector<1x256xi1> to vector<4x256xi1>
    %341 = arith.select %340, %336, %338 : vector<4x256xi1>, vector<4x256xf32>
    %c253_i32_115 = arith.constant 253 : i32
    %342 = tpu.dynamic_rotate %321 by %c253_i32_115 dim 1 : vector<4x256xf32>, i32 -> vector<4x256xf32>
    %c125_i32 = arith.constant 125 : i32
    %343 = tpu.dynamic_rotate %322 by %c125_i32 dim 1 : vector<4x128xf32>, i32 -> vector<4x128xf32>
    %344 = tpu.concatenate %343, %343 in 1 : vector<4x128xf32>, vector<4x128xf32> -> vector<4x256xf32>
    %345 = vector.shape_cast %329 : vector<1x256xi1> to vector<1x256xi1>
    %346 = vector.broadcast %345 : vector<1x256xi1> to vector<4x256xi1>
    %347 = arith.select %346, %342, %344 : vector<4x256xi1>, vector<4x256xf32>
    %c255_i32_116 = arith.constant 255 : i32
    %348 = tpu.dynamic_rotate %160 by %c255_i32_116 dim 1 : vector<1x256xf32>, i32 -> vector<1x256xf32>
    %c127_i32_117 = arith.constant 127 : i32
    %349 = tpu.dynamic_rotate %320 by %c127_i32_117 dim 1 : vector<1x128xf32>, i32 -> vector<1x128xf32>
    %350 = tpu.concatenate %349, %349 in 1 : vector<1x128xf32>, vector<1x128xf32> -> vector<1x256xf32>
    %351 = arith.select %325, %348, %350 : vector<1x256xi1>, vector<1x256xf32>
    %c254_i32_118 = arith.constant 254 : i32
    %352 = tpu.dynamic_rotate %160 by %c254_i32_118 dim 1 : vector<1x256xf32>, i32 -> vector<1x256xf32>
    %c126_i32_119 = arith.constant 126 : i32
    %353 = tpu.dynamic_rotate %320 by %c126_i32_119 dim 1 : vector<1x128xf32>, i32 -> vector<1x128xf32>
    %354 = tpu.concatenate %353, %353 in 1 : vector<1x128xf32>, vector<1x128xf32> -> vector<1x256xf32>
    %355 = arith.select %327, %352, %354 : vector<1x256xi1>, vector<1x256xf32>
    %c1_120 = arith.constant 1 : index
    %356 = memref.load %arg1[%c1_120] : memref<8xf32, #tpu.memory_space<smem>>
    %c2_121 = arith.constant 2 : index
    %357 = memref.load %arg1[%c2_121] : memref<8xf32, #tpu.memory_space<smem>>
    %c3 = arith.constant 3 : index
    %358 = memref.load %arg1[%c3] : memref<8xf32, #tpu.memory_space<smem>>
    %c4 = arith.constant 4 : index
    %359 = memref.load %arg1[%c4] : memref<8xf32, #tpu.memory_space<smem>>
    %c5 = arith.constant 5 : index
    %360 = memref.load %arg1[%c5] : memref<8xf32, #tpu.memory_space<smem>>
    %c6 = arith.constant 6 : index
    %361 = memref.load %arg1[%c6] : memref<8xf32, #tpu.memory_space<smem>>
    %362 = vector.broadcast %361 : f32 to vector<4x256xf32>
    %363 = arith.mulf %362, %321 : vector<4x256xf32>
    %364 = vector.broadcast %358 : f32 to vector<4x256xf32>
    %365 = arith.mulf %364, %335 : vector<4x256xf32>
    %366 = arith.subf %363, %365 : vector<4x256xf32>
    %367 = vector.broadcast %160 : vector<1x256xf32> to vector<4x256xf32>
    %368 = arith.mulf %367, %366 : vector<4x256xf32>
    %369 = vector.broadcast %361 : f32 to vector<4x256xf32>
    %370 = arith.mulf %369, %335 : vector<4x256xf32>
    %371 = vector.broadcast %358 : f32 to vector<4x256xf32>
    %372 = arith.mulf %371, %341 : vector<4x256xf32>
    %373 = arith.subf %370, %372 : vector<4x256xf32>
    %374 = vector.broadcast %351 : vector<1x256xf32> to vector<4x256xf32>
    %375 = arith.mulf %374, %373 : vector<4x256xf32>
    %376 = vector.broadcast %361 : f32 to vector<4x256xf32>
    %377 = arith.mulf %376, %341 : vector<4x256xf32>
    %378 = vector.broadcast %358 : f32 to vector<4x256xf32>
    %379 = arith.mulf %378, %347 : vector<4x256xf32>
    %380 = arith.subf %377, %379 : vector<4x256xf32>
    %381 = vector.broadcast %355 : vector<1x256xf32> to vector<4x256xf32>
    %382 = arith.mulf %381, %380 : vector<4x256xf32>
    %383 = arith.subf %335, %375 : vector<4x256xf32>
    %384 = vector.broadcast %359 : f32 to vector<4x256xf32>
    %385 = arith.mulf %384, %383 : vector<4x256xf32>
    %386 = vector.broadcast %356 : f32 to vector<4x256xf32>
    %387 = arith.mulf %386, %368 : vector<4x256xf32>
    %388 = arith.addf %385, %387 : vector<4x256xf32>
    %389 = vector.broadcast %160 : vector<1x256xf32> to vector<4x256xf32>
    %390 = arith.mulf %389, %388 : vector<4x256xf32>
    %391 = arith.subf %341, %382 : vector<4x256xf32>
    %392 = vector.broadcast %359 : f32 to vector<4x256xf32>
    %393 = arith.mulf %392, %391 : vector<4x256xf32>
    %394 = vector.broadcast %356 : f32 to vector<4x256xf32>
    %395 = arith.mulf %394, %375 : vector<4x256xf32>
    %396 = arith.addf %393, %395 : vector<4x256xf32>
    %397 = vector.broadcast %351 : vector<1x256xf32> to vector<4x256xf32>
    %398 = arith.mulf %397, %396 : vector<4x256xf32>
    %399 = arith.subf %341, %398 : vector<4x256xf32>
    %400 = vector.broadcast %360 : f32 to vector<4x256xf32>
    %401 = arith.mulf %400, %399 : vector<4x256xf32>
    %402 = vector.broadcast %357 : f32 to vector<4x256xf32>
    %403 = arith.mulf %402, %390 : vector<4x256xf32>
    %404 = arith.addf %401, %403 : vector<4x256xf32>
    %405 = vector.broadcast %160 : vector<1x256xf32> to vector<4x256xf32>
    %406 = arith.mulf %405, %404 : vector<4x256xf32>
    %c0_122 = arith.constant 0 : index
    %c0_123 = arith.constant 0 : index
    %407 = vector.load %arg7[%c0_122, %c0_123] : memref<4x256xf32, #tpu.memory_space<vmem>>, vector<4x256xf32>
    tpu.vector_store %arg7[%c0_122, %c0_123], %406 {strides = array<i32>} : memref<4x256xf32, #tpu.memory_space<vmem>>, vector<4x256xf32>,
    return
  }
  func.func @transform_0(%arg0: i32) -> i32 {
    %c0_i32 = arith.constant 0 : i32
    %c0_i32_0 = arith.constant 0 : i32
    return %c0_i32 : i32
  }
  func.func @transform_1(%arg0: i32) -> (i32, i32) {
    %c0_i32 = arith.constant 0 : i32
    %c0_i32_0 = arith.constant 0 : i32
    return %c0_i32, %arg0 : i32, i32
  }
  func.func @transform_2(%arg0: i32) -> (i32, i32) {
    %c1_i32 = arith.constant 1 : i32
    %0 = arith.addi %arg0, %c1_i32 : i32
    %c2_i32 = arith.constant 2 : i32
    %c0_i32 = arith.constant 0 : i32
    %1 = arith.cmpi eq, %c2_i32, %c0_i32 : i32
    %c1_i32_0 = arith.constant 1 : i32
    %2 = arith.select %1, %c1_i32_0, %c2_i32 : i32
    %3 = arith.remsi %0, %2 : i32
    %c0_i32_1 = arith.constant 0 : i32
    %4 = arith.cmpi ne, %3, %c0_i32_1 : i32
    %c0_i32_2 = arith.constant 0 : i32
    %5 = arith.cmpi slt, %3, %c0_i32_2 : i32
    %c0_i32_3 = arith.constant 0 : i32
    %6 = arith.cmpi slt, %2, %c0_i32_3 : i32
    %7 = arith.xori %5, %6 : i1
    %8 = arith.andi %7, %4 : i1
    %9 = arith.addi %3, %2 : i32
    %10 = arith.select %8, %9, %3 : i32
    %c2_i32_4 = arith.constant 2 : i32
    %11 = arith.muli %10, %c2_i32_4 : i32
    %c0_i32_5 = arith.constant 0 : i32
    %c0_i32_6 = arith.constant 0 : i32
    return %c0_i32_5, %11 : i32, i32
  }
  func.func @transform_3(%arg0: i32) -> (i32, i32) {
    %c0_i32 = arith.constant 0 : i32
    %c0_i32_0 = arith.constant 0 : i32
    return %c0_i32, %arg0 : i32, i32
  }
  func.func @transform_4(%arg0: i32) -> (i32, i32) {
    %c1_i32 = arith.constant 1 : i32
    %0 = arith.addi %arg0, %c1_i32 : i32
    %c2_i32 = arith.constant 2 : i32
    %c0_i32 = arith.constant 0 : i32
    %1 = arith.cmpi eq, %c2_i32, %c0_i32 : i32
    %c1_i32_0 = arith.constant 1 : i32
    %2 = arith.select %1, %c1_i32_0, %c2_i32 : i32
    %3 = arith.remsi %0, %2 : i32
    %c0_i32_1 = arith.constant 0 : i32
    %4 = arith.cmpi ne, %3, %c0_i32_1 : i32
    %c0_i32_2 = arith.constant 0 : i32
    %5 = arith.cmpi slt, %3, %c0_i32_2 : i32
    %c0_i32_3 = arith.constant 0 : i32
    %6 = arith.cmpi slt, %2, %c0_i32_3 : i32
    %7 = arith.xori %5, %6 : i1
    %8 = arith.andi %7, %4 : i1
    %9 = arith.addi %3, %2 : i32
    %10 = arith.select %8, %9, %3 : i32
    %c2_i32_4 = arith.constant 2 : i32
    %11 = arith.muli %10, %c2_i32_4 : i32
    %c0_i32_5 = arith.constant 0 : i32
    %c0_i32_6 = arith.constant 0 : i32
    return %c0_i32_5, %11 : i32, i32
  }
  func.func @transform_5(%arg0: i32) -> (i32, i32) {
    %c0_i32 = arith.constant 0 : i32
    %c0_i32_0 = arith.constant 0 : i32
    %c0_i32_1 = arith.constant 0 : i32
    return %c0_i32, %c0_i32_0 : i32, i32
  }
  func.func @transform_6(%arg0: i32) -> (i32, i32) {
    %c0_i32 = arith.constant 0 : i32
    %c0_i32_0 = arith.constant 0 : i32
    return %c0_i32, %arg0 : i32, i32
  }
}

</mosaic_0001>

<llo_original>
// kernel: time_dependent_allpass.1
$region0: #{time_dependent_allpass.1}
  #allocation0 [shape = 'u32[]', space=smem, size = 0x4, offset = 0x4, fixed_abs, tag = 'smem constant byte address 0x4 - core index']
  #allocation1 [shape = 'u32[144,128]{1,0:T(1,128)}', space=vmem, size = 0x12000, scoped, tag = 'internal scratch']
  %s0 = inlined_call_operand.vmem [shape: f32[8], index: 0, kind: input, shape index: {}]
  %s1 = inlined_call_operand.vmem [shape: f32[1,512], index: 1, kind: input, shape index: {}, may-alias: {1,2}]
  %s2 = inlined_call_operand.vmem [shape: f32[1,512], index: 2, kind: input, shape index: {}, may-alias: {1,2}]
  %s3 = inlined_call_operand.vmem [shape: f32[4,512], index: 3, kind: input, shape index: {}, may-alias: {3,4}]
  %s4 = inlined_call_operand.vmem [shape: f32[4,512], index: 4, kind: input, shape index: {}, may-alias: {3,4}]
  %s5 = inlined_call_operand.vmem [shape: f32[256,3], index: 5, kind: input, shape index: {}]
  %s6 = inlined_call_operand.hbm [shape: f32[4,512], index: 6, kind: output, shape index: {}]
  %s7 = sld [smem:[#allocation0]]
  $region61: #{time_dependent_allpass.1} parent=0
    _
  %s9 = ssub.s32 1, %s7
  %s10 = scalar_select 0, %s9, %s7
  $region1: #{time_dependent_allpass.1} parent=0
    #allocation2 [shape = 'u8[512]{0}', space=smem, size = 0x200, scoped, tag = 'input window, operand 0, single buffered']
    #allocation3 [shape = 's32[2]{0}', space=sflag, size = 0x8, scoped, tag = 'scoped memory for time_dependent_allpass.1']
    #allocation4 [shape = 's32[2]{0}', space=sflag, size = 0x8, scoped, tag = 'scoped memory for time_dependent_allpass.1']
    #allocation5 [shape = 'u8[8192]{0}', space=vmem, size = 0x2000, scoped, tag = 'output window, operand 0']
    %11 = vsyncpa [#allocation4], 0
    %12 = vsyncpa [#allocation3], 0
    %s13 = scalar_lea.sflag [#allocation3], 1
    %14 = vsyncpa %s13, 0
    loop: start=0, step=1, limit=4
    $region2: #{time_dependent_allpass.1} parent=1 // loop_pre_header
      _
    $region3: #{time_dependent_allpass.1} parent=1 // loop_header
      %s16 = sphi 0, %s20
      %p17 = scmp.ge.s32.totalorder %s16, 4
      %s24 = sphi 0, %s24
      %s26 = sphi 0, %s24
      %s27 = sphi 0, %s26
      %s41 = sphi 0, %s27
      %s47 = sphi 0, %s49
      %s50 = sphi 0, %s47
      %s51 = sphi 0, %s50
      %s67 = sphi 0, %s51
      %s101 = sphi 0, %s103
      %s104 = sphi 0, %s101
      %s105 = sphi 0, %s104
      %s121 = sphi 0, %s105
      %s127 = sphi 0, %s129
      %s130 = sphi 0, %s127
      %s131 = sphi 0, %s130
      %s147 = sphi 0, %s131
      %s181 = sphi 0, %s183
      %s184 = sphi 0, %s181
      %s185 = sphi 0, %s184
      %s201 = sphi 0, %s185
      %s205 = sphi 0, %s205
      %s207 = sphi 0, %s205
      %s208 = sphi 0, %s207
      %s222 = sphi 0, %s208
      %s228 = sphi 0, %s230
      %s231 = sphi 0, %s228
      %s232 = sphi 0, %s231
      %s248 = sphi 0, %s232
    $region4: #{time_dependent_allpass.1} parent=1 // loop_header_branch
      %19 = sbr.rel (%p17) target = $region8
    $region5: #{time_dependent_allpass.1} parent=1 // loop_body
      %s21 = ssub.s32 %s16, 1
      %s22 = ssub.s32 %s16, 2
      %s23 = sadd.s32 %s16, 1
      %s25 = sadd.s32 %s24, 1
      %p28 = scmp.eq.s32.totalorder %s16, 1
      %p29 = scmp.ne.s32.totalorder %s24, %s26
      %p30 = scmp.eq.s32.totalorder %s16, 0
      %p31 = por %p29, %p30
      %p32 = scmp.ne.s32.totalorder %s24, %s26
      %p33 = scmp.eq.s32.totalorder %s21, 1
      %p34 = por %p32, %p33
      %p35 = scmp.ne.s32.totalorder %s26, %s27
      %p36 = scmp.eq.s32.totalorder %s21, 0
      %p37 = por %p35, %p36
      %p38 = scmp.ne.s32.totalorder %s26, %s27
      %p39 = scmp.eq.s32.totalorder %s22, 1
      %p40 = por %p38, %p39
      %p42 = scmp.ne.s32.totalorder %s27, %s41
      %p43 = scmp.eq.s32.totalorder %s22, 0
      %p44 = por %p42, %p43
      %s45 = ssub.s32 %s16, %s23
      %p46 = scmp.eq.s32.totalorder %s45, 0
      %s48 = sadd.s32 %s47, 1
      %s49 = scalar_select %p46, %s47, %s48
      %p52 = pneg %p46
      %p53 = scmp.eq.s32.totalorder %s16, 1
      %p54 = por %p52, %p53
      %p55 = scmp.ne.s32.totalorder %s47, %s50
      %p56 = scmp.eq.s32.totalorder %s16, 0
      %p57 = por %p55, %p56
      %p58 = scmp.ne.s32.totalorder %s47, %s50
      %p59 = scmp.eq.s32.totalorder %s21, 1
      %p60 = por %p58, %p59
      %p61 = scmp.ne.s32.totalorder %s50, %s51
      %p62 = scmp.eq.s32.totalorder %s21, 0
      %p63 = por %p61, %p62
      %p64 = scmp.ne.s32.totalorder %s50, %s51
      %p65 = scmp.eq.s32.totalorder %s22, 1
      %p66 = por %p64, %p65
      %p68 = scmp.ne.s32.totalorder %s51, %s67
      %p69 = scmp.eq.s32.totalorder %s22, 0
      %p70 = por %p68, %p69
      %s71 = sadd.s32 %s16, 1
      %p72 = scmp.lt.s32.totalorder %s71, 0
      %s73 = ssub.s32 0, %s71
      %s74 = scalar_select %p72, %s73, %s71
      %s75 = sand.u32 %s74, 1
      %s76 = ssub.s32 0, %s75
      %s77 = scalar_select %p72, %s76, %s75
      %p78 = scmp.ne.s32.totalorder %s77, 0
      %p79 = scmp.lt.s32.totalorder %s77, 0
      %p80 = pnand %p79, %p78
      %p81 = pneg %p80
      %s82 = sadd.s32 %s77, 2
      %s83 = scalar_select %p81, %s82, %s77
      %s84 = smul.u32 %s83, 2
      %s85 = sadd.s32 %s23, 1
      %p86 = scmp.lt.s32.totalorder %s85, 0
      %s87 = ssub.s32 0, %s85
      %s88 = scalar_select %p86, %s87, %s85
      %s89 = sand.u32 %s88, 1
      %s90 = ssub.s32 0, %s89
      %s91 = scalar_select %p86, %s90, %s89
      %p92 = scmp.ne.s32.totalorder %s91, 0
      %p93 = scmp.lt.s32.totalorder %s91, 0
      %p94 = pnand %p93, %p92
      %p95 = pneg %p94
      %s96 = sadd.s32 %s91, 2
      %s97 = scalar_select %p95, %s96, %s91
      %s98 = smul.u32 %s97, 2
      %s99 = ssub.s32 %s84, %s98
      %p100 = scmp.eq.s32.totalorder %s99, 0
      %s102 = sadd.s32 %s101, 1
      %s103 = scalar_select %p100, %s101, %s102
      %p106 = pneg %p100
      %p107 = scmp.eq.s32.totalorder %s16, 1
      %p108 = por %p106, %p107
      %p109 = scmp.ne.s32.totalorder %s101, %s104
      %p110 = scmp.eq.s32.totalorder %s16, 0
      %p111 = por %p109, %p110
      %p112 = scmp.ne.s32.totalorder %s101, %s104
      %p113 = scmp.eq.s32.totalorder %s21, 1
      %p114 = por %p112, %p113
      %p115 = scmp.ne.s32.totalorder %s104, %s105
      %p116 = scmp.eq.s32.totalorder %s21, 0
      %p117 = por %p115, %p116
      %p118 = scmp.ne.s32.totalorder %s104, %s105
      %p119 = scmp.eq.s32.totalorder %s22, 1
      %p120 = por %p118, %p119
      %p122 = scmp.ne.s32.totalorder %s105, %s121
      %p123 = scmp.eq.s32.totalorder %s22, 0
      %p124 = por %p122, %p123
      %s125 = ssub.s32 %s16, %s23
      %p126 = scmp.eq.s32.totalorder %s125, 0
      %s128 = sadd.s32 %s127, 1
      %s129 = scalar_select %p126, %s127, %s128
      %p132 = pneg %p126
      %p133 = scmp.eq.s32.totalorder %s16, 1
      %p134 = por %p132, %p133
      %p135 = scmp.ne.s32.totalorder %s127, %s130
      %p136 = scmp.eq.s32.totalorder %s16, 0
      %p137 = por %p135, %p136
      %p138 = scmp.ne.s32.totalorder %s127, %s130
      %p139 = scmp.eq.s32.totalorder %s21, 1
      %p140 = por %p138, %p139
      %p141 = scmp.ne.s32.totalorder %s130, %s131
      %p142 = scmp.eq.s32.totalorder %s21, 0
      %p143 = por %p141, %p142
      %p144 = scmp.ne.s32.totalorder %s130, %s131
      %p145 = scmp.eq.s32.totalorder %s22, 1
      %p146 = por %p144, %p145
      %p148 = scmp.ne.s32.totalorder %s131, %s147
      %p149 = scmp.eq.s32.totalorder %s22, 0
      %p150 = por %p148, %p149
      %s151 = sadd.s32 %s16, 1
      %p152 = scmp.lt.s32.totalorder %s151, 0
      %s153 = ssub.s32 0, %s151
      %s154 = scalar_select %p152, %s153, %s151
      %s155 = sand.u32 %s154, 1
      %s156 = ssub.s32 0, %s155
      %s157 = scalar_select %p152, %s156, %s155
      %p158 = scmp.ne.s32.totalorder %s157, 0
      %p159 = scmp.lt.s32.totalorder %s157, 0
      %p160 = pnand %p159, %p158
      %p161 = pneg %p160
      %s162 = sadd.s32 %s157, 2
      %s163 = scalar_select %p161, %s162, %s157
      %s164 = smul.u32 %s163, 2
      %s165 = sadd.s32 %s23, 1
      %p166 = scmp.lt.s32.totalorder %s165, 0
      %s167 = ssub.s32 0, %s165
      %s168 = scalar_select %p166, %s167, %s165
      %s169 = sand.u32 %s168, 1
      %s170 = ssub.s32 0, %s169
      %s171 = scalar_select %p166, %s170, %s169
      %p172 = scmp.ne.s32.totalorder %s171, 0
      %p173 = scmp.lt.s32.totalorder %s171, 0
      %p174 = pnand %p173, %p172
      %p175 = pneg %p174
      %s176 = sadd.s32 %s171, 2
      %s177 = scalar_select %p175, %s176, %s171
      %s178 = smul.u32 %s177, 2
      %s179 = ssub.s32 %s164, %s178
      %p180 = scmp.eq.s32.totalorder %s179, 0
      %s182 = sadd.s32 %s181, 1
      %s183 = scalar_select %p180, %s181, %s182
      %p186 = pneg %p180
      %p187 = scmp.eq.s32.totalorder %s16, 1
      %p188 = por %p186, %p187
      %p189 = scmp.ne.s32.totalorder %s181, %s184
      %p190 = scmp.eq.s32.totalorder %s16, 0
      %p191 = por %p189, %p190
      %p192 = scmp.ne.s32.totalorder %s181, %s184
      %p193 = scmp.eq.s32.totalorder %s21, 1
      %p194 = por %p192, %p193
      %p195 = scmp.ne.s32.totalorder %s184, %s185
      %p196 = scmp.eq.s32.totalorder %s21, 0
      %p197 = por %p195, %p196
      %p198 = scmp.ne.s32.totalorder %s184, %s185
      %p199 = scmp.eq.s32.totalorder %s22, 1
      %p200 = por %p198, %p199
      %p202 = scmp.ne.s32.totalorder %s185, %s201
      %p203 = scmp.eq.s32.totalorder %s22, 0
      %p204 = por %p202, %p203
      %s206 = sadd.s32 %s205, 1
      %p209 = scmp.eq.s32.totalorder %s16, 1
      %p210 = scmp.ne.s32.totalorder %s205, %s207
      %p211 = scmp.eq.s32.totalorder %s16, 0
      %p212 = por %p210, %p211
      %p213 = scmp.ne.s32.totalorder %s205, %s207
      %p214 = scmp.eq.s32.totalorder %s21, 1
      %p215 = por %p213, %p214
      %p216 = scmp.ne.s32.totalorder %s207, %s208
      %p217 = scmp.eq.s32.totalorder %s21, 0
      %p218 = por %p216, %p217
      %p219 = scmp.ne.s32.totalorder %s207, %s208
      %p220 = scmp.eq.s32.totalorder %s22, 1
      %p221 = por %p219, %p220
      %p223 = scmp.ne.s32.totalorder %s208, %s222
      %p224 = scmp.eq.s32.totalorder %s22, 0
      %p225 = por %p223, %p224
      %s226 = ssub.s32 %s16, %s23
      %p227 = scmp.eq.s32.totalorder %s226, 0
      %s229 = sadd.s32 %s228, 1
      %s230 = scalar_select %p227, %s228, %s229
      %p233 = pneg %p227
      %p234 = scmp.eq.s32.totalorder %s16, 1
      %p235 = por %p233, %p234
      %p236 = scmp.ne.s32.totalorder %s228, %s231
      %p237 = scmp.eq.s32.totalorder %s16, 0
      %p238 = por %p236, %p237
      %p239 = scmp.ne.s32.totalorder %s228, %s231
      %p240 = scmp.eq.s32.totalorder %s21, 1
      %p241 = por %p239, %p240
      %p242 = scmp.ne.s32.totalorder %s231, %s232
      %p243 = scmp.eq.s32.totalorder %s21, 0
      %p244 = por %p242, %p243
      %p245 = scmp.ne.s32.totalorder %s231, %s232
      %p246 = scmp.eq.s32.totalorder %s22, 1
      %p247 = por %p245, %p246
      %p249 = scmp.ne.s32.totalorder %s232, %s248
      %p250 = scmp.eq.s32.totalorder %s22, 0
      %p251 = por %p249, %p250
      %p252 = scmp.le.s32.totalorder 1, %s16
      %p253 = scmp.lt.s32.totalorder %s16, 3
      %p254 = pnand %p252, %p253
      %p255 = pneg %p254
      // Predicated region
      $region9: #{time_dependent_allpass.1} parent=5 // pred_check
        _
      $region10: #{time_dependent_allpass.1} parent=5 // pred_check_branch
        %257 = sbr.rel (%p254) target = $region12
      $region11: #{time_dependent_allpass.1} parent=5 // pred_region
        %s258 = ssub.s32 %s16, 1
        // Predicated region
        $region13: #{time_dependent_allpass.1} parent=11 // pred_check
          %p259 = pneg %p37
        $region14: #{time_dependent_allpass.1} parent=11 // pred_check_branch
          %261 = sbr.rel (%p259) target = $region16
        $region15: #{time_dependent_allpass.1} parent=11 // pred_region
          %s263 = ssub.s32 16, 16
          %264 = vsyncadd [#allocation4], %s263
          %s266 = sshll.u32 %s0, 4
          %s267 = int_to_ptr.vmem [resolvable:$true] %s266
          %269 = dma.vmem_to_smem %s267, 16, [#allocation2], [#allocation4]
        $region16: #{time_dependent_allpass.1} parent=11 // pred_fallthru
          _
        // Predicated region
        $region17: #{time_dependent_allpass.1} parent=11 // pred_check
          %p270 = pneg %p218
        $region18: #{time_dependent_allpass.1} parent=11 // pred_check_branch
          %272 = sbr.rel (%p270) target = $region20
        $region19: #{time_dependent_allpass.1} parent=11 // pred_region
          _
        $region20: #{time_dependent_allpass.1} parent=11 // pred_fallthru
          _
      $region12: #{time_dependent_allpass.1} parent=5 // pred_fallthru
        _
      %p273 = scmp.lt.s32.totalorder %s16, 2
      // Predicated region
      $region21: #{time_dependent_allpass.1} parent=5 // pred_check
        %p274 = pneg %p273
      $region22: #{time_dependent_allpass.1} parent=5 // pred_check_branch
        %276 = sbr.rel (%p274) target = $region24
      $region23: #{time_dependent_allpass.1} parent=5 // pred_region
        // Predicated region
        $region25: #{time_dependent_allpass.1} parent=23 // pred_check
          %p277 = pneg %p57
        $region26: #{time_dependent_allpass.1} parent=23 // pred_check_branch
          %279 = sbr.rel (%p277) target = $region28
        $region27: #{time_dependent_allpass.1} parent=23 // pred_region
          %s280 = smul.u32 2, %s16
          %p281 = scmp.lt.s32.totalorder %s280, 3
          %s282 = scalar_select %p281, %s280, 3
          %s283 = scalar_lea.vmem %s1, %s282
          %s284 = smul.u32 2, %s16
        $region28: #{time_dependent_allpass.1} parent=23 // pred_fallthru
          _
        // Predicated region
        $region29: #{time_dependent_allpass.1} parent=23 // pred_check
          %p285 = pneg %p111
        $region30: #{time_dependent_allpass.1} parent=23 // pred_check_branch
          %287 = sbr.rel (%p285) target = $region32
        $region31: #{time_dependent_allpass.1} parent=23 // pred_region
          %s288 = sadd.s32 %s16, 1
          %p289 = scmp.lt.s32.totalorder %s288, 0
          %s290 = ssub.s32 0, %s288
          %s291 = scalar_select %p289, %s290, %s288
          %s292 = sand.u32 %s291, 1
          %s293 = ssub.s32 0, %s292
          %s294 = scalar_select %p289, %s293, %s292
          %p295 = scmp.ne.s32.totalorder %s294, 0
          %p296 = scmp.lt.s32.totalorder %s294, 0
          %p297 = pnand %p296, %p295
          %p298 = pneg %p297
          %s299 = sadd.s32 %s294, 2
          %s300 = scalar_select %p298, %s299, %s294
          %s301 = smul.u32 %s300, 2
          %p302 = scmp.lt.s32.totalorder %s301, 3
          %s303 = scalar_select %p302, %s301, 3
          %s304 = scalar_lea.vmem %s2, %s303
          %s305 = sadd.s32 %s16, 1
          %p306 = scmp.lt.s32.totalorder %s305, 0
          %s307 = ssub.s32 0, %s305
          %s308 = scalar_select %p306, %s307, %s305
          %s309 = sand.u32 %s308, 1
          %s310 = ssub.s32 0, %s309
          %s311 = scalar_select %p306, %s310, %s309
          %p312 = scmp.ne.s32.totalorder %s311, 0
          %p313 = scmp.lt.s32.totalorder %s311, 0
          %p314 = pnand %p313, %p312
          %p315 = pneg %p314
          %s316 = sadd.s32 %s311, 2
          %s317 = scalar_select %p315, %s316, %s311
          %s318 = smul.u32 %s317, 2
        $region32: #{time_dependent_allpass.1} parent=23 // pred_fallthru
          _
        // Predicated region
        $region33: #{time_dependent_allpass.1} parent=23 // pred_check
          %p319 = pneg %p137
        $region34: #{time_dependent_allpass.1} parent=23 // pred_check_branch
          %321 = sbr.rel (%p319) target = $region36
        $region35: #{time_dependent_allpass.1} parent=23 // pred_region
          %s322 = smul.u32 2, %s16
          %p323 = scmp.lt.s32.totalorder %s322, 3
          %s324 = scalar_select %p323, %s322, 3
          %s325 = smul.addr %s324, 4
          %s326 = scalar_lea.vmem %s3, %s325
          %s327 = smul.u32 2, %s16
        $region36: #{time_dependent_allpass.1} parent=23 // pred_fallthru
          _
        // Predicated region
        $region37: #{time_dependent_allpass.1} parent=23 // pred_check
          %p328 = pneg %p191
        $region38: #{time_dependent_allpass.1} parent=23 // pred_check_branch
          %330 = sbr.rel (%p328) target = $region40
        $region39: #{time_dependent_allpass.1} parent=23 // pred_region
          %s331 = sadd.s32 %s16, 1
          %p332 = scmp.lt.s32.totalorder %s331, 0
          %s333 = ssub.s32 0, %s331
          %s334 = scalar_select %p332, %s333, %s331
          %s335 = sand.u32 %s334, 1
          %s336 = ssub.s32 0, %s335
          %s337 = scalar_select %p332, %s336, %s335
          %p338 = scmp.ne.s32.totalorder %s337, 0
          %p339 = scmp.lt.s32.totalorder %s337, 0
          %p340 = pnand %p339, %p338
          %p341 = pneg %p340
          %s342 = sadd.s32 %s337, 2
          %s343 = scalar_select %p341, %s342, %s337
          %s344 = smul.u32 %s343, 2
          %p345 = scmp.lt.s32.totalorder %s344, 3
          %s346 = scalar_select %p345, %s344, 3
          %s347 = smul.addr %s346, 4
          %s348 = scalar_lea.vmem %s4, %s347
          %s349 = sadd.s32 %s16, 1
          %p350 = scmp.lt.s32.totalorder %s349, 0
          %s351 = ssub.s32 0, %s349
          %s352 = scalar_select %p350, %s351, %s349
          %s353 = sand.u32 %s352, 1
          %s354 = ssub.s32 0, %s353
          %s355 = scalar_select %p350, %s354, %s353
          %p356 = scmp.ne.s32.totalorder %s355, 0
          %p357 = scmp.lt.s32.totalorder %s355, 0
          %p358 = pnand %p357, %p356
          %p359 = pneg %p358
          %s360 = sadd.s32 %s355, 2
          %s361 = scalar_select %p359, %s360, %s355
          %s362 = smul.u32 %s361, 2
        $region40: #{time_dependent_allpass.1} parent=23 // pred_fallthru
          _
      $region24: #{time_dependent_allpass.1} parent=5 // pred_fallthru
        _
      %p363 = scmp.le.s32.totalorder 1, %s16
      %p364 = scmp.lt.s32.totalorder %s16, 3
      %p365 = pnand %p363, %p364
      %p366 = pneg %p365
      // Predicated region
      $region41: #{time_dependent_allpass.1} parent=5 // pred_check
        _
      $region42: #{time_dependent_allpass.1} parent=5 // pred_check_branch
        %368 = sbr.rel (%p365) target = $region44
      $region43: #{time_dependent_allpass.1} parent=5 // pred_region
        %s369 = ssub.s32 %s16, 1
        // Predicated region
        $region45: #{time_dependent_allpass.1} parent=43 // pred_check
          %p370 = pneg %p37
        $region46: #{time_dependent_allpass.1} parent=43 // pred_check_branch
          %372 = sbr.rel (%p370) target = $region48
        $region47: #{time_dependent_allpass.1} parent=43 // pred_region
          %373 = dma.done [#allocation4], 16
        $region48: #{time_dependent_allpass.1} parent=43 // pred_fallthru
          _
        %374 = sfence
        %p375 = pneg %p37
        %p376 = pneg %p34
        %s377 = smul.u32 2, %s21
        %p378 = scmp.lt.s32.totalorder %s377, 3
        %s379 = scalar_select %p378, %s377, 3
        %s380 = scalar_lea.vmem %s1, %s379
        %p381 = pneg %p63
        %p382 = pneg %p60
        %s383 = sadd.s32 %s21, 1
        %p384 = scmp.lt.s32.totalorder %s383, 0
        %s385 = ssub.s32 0, %s383
        %s386 = scalar_select %p384, %s385, %s383
        %s387 = sand.u32 %s386, 1
        %s388 = ssub.s32 0, %s387
        %s389 = scalar_select %p384, %s388, %s387
        %p390 = scmp.ne.s32.totalorder %s389, 0
        %p391 = scmp.lt.s32.totalorder %s389, 0
        %p392 = pnand %p391, %p390
        %p393 = pneg %p392
        %s394 = sadd.s32 %s389, 2
        %s395 = scalar_select %p393, %s394, %s389
        %s396 = smul.u32 %s395, 2
        %p397 = scmp.lt.s32.totalorder %s396, 3
        %s398 = scalar_select %p397, %s396, 3
        %s399 = scalar_lea.vmem %s2, %s398
        %p400 = pneg %p117
        %p401 = pneg %p114
        %s402 = smul.u32 2, %s21
        %p403 = scmp.lt.s32.totalorder %s402, 3
        %s404 = scalar_select %p403, %s402, 3
        %s405 = smul.addr %s404, 4
        %s406 = scalar_lea.vmem %s3, %s405
        %p407 = pneg %p143
        %p408 = pneg %p140
        %s409 = sadd.s32 %s21, 1
        %p410 = scmp.lt.s32.totalorder %s409, 0
        %s411 = ssub.s32 0, %s409
        %s412 = scalar_select %p410, %s411, %s409
        %s413 = sand.u32 %s412, 1
        %s414 = ssub.s32 0, %s413
        %s415 = scalar_select %p410, %s414, %s413
        %p416 = scmp.ne.s32.totalorder %s415, 0
        %p417 = scmp.lt.s32.totalorder %s415, 0
        %p418 = pnand %p417, %p416
        %p419 = pneg %p418
        %s420 = sadd.s32 %s415, 2
        %s421 = scalar_select %p419, %s420, %s415
        %s422 = smul.u32 %s421, 2
        %p423 = scmp.lt.s32.totalorder %s422, 3
        %s424 = scalar_select %p423, %s422, 3
        %s425 = smul.addr %s424, 4
        %s426 = scalar_lea.vmem %s4, %s425
        %p427 = pneg %p197
        %p428 = pneg %p194
        %p429 = pneg %p218
        %p430 = pneg %p215
        %p431 = pneg %p244
        %p432 = pneg %p241
        %s433 = sand.u32 %s231, 1
        %s434 = scalar_lea.sflag [#allocation3], %s433
        %s435 = sand.u32 %s231, 1
        %s436 = smul.addr %s435, 8
        %s437 = scalar_lea.vmem [#allocation5], %s436
        %s438 = smul.u32 2, %s21
        %p439 = scmp.lt.s32.totalorder %s438, 3
        %s440 = scalar_select %p439, %s438, 3
        %s441 = scalar_lea.vmem %s1, %s440
        %s442 = smul.u32 2, %s21
        %s443 = sadd.s32 %s21, 1
        %p444 = scmp.lt.s32.totalorder %s443, 0
        %s445 = ssub.s32 0, %s443
        %s446 = scalar_select %p444, %s445, %s443
        %s447 = sand.u32 %s446, 1
        %s448 = ssub.s32 0, %s447
        %s449 = scalar_select %p444, %s448, %s447
        %p450 = scmp.ne.s32.totalorder %s449, 0
        %p451 = scmp.lt.s32.totalorder %s449, 0
        %p452 = pnand %p451, %p450
        %p453 = pneg %p452
        %s454 = sadd.s32 %s449, 2
        %s455 = scalar_select %p453, %s454, %s449
        %s456 = smul.u32 %s455, 2
        %p457 = scmp.lt.s32.totalorder %s456, 3
        %s458 = scalar_select %p457, %s456, 3
        %s459 = scalar_lea.vmem %s2, %s458
        %s460 = sadd.s32 %s21, 1
        %p461 = scmp.lt.s32.totalorder %s460, 0
        %s462 = ssub.s32 0, %s460
        %s463 = scalar_select %p461, %s462, %s460
        %s464 = sand.u32 %s463, 1
        %s465 = ssub.s32 0, %s464
        %s466 = scalar_select %p461, %s465, %s464
        %p467 = scmp.ne.s32.totalorder %s466, 0
        %p468 = scmp.lt.s32.totalorder %s466, 0
        %p469 = pnand %p468, %p467
        %p470 = pneg %p469
        %s471 = sadd.s32 %s466, 2
        %s472 = scalar_select %p470, %s471, %s466
        %s473 = smul.u32 %s472, 2
        %s474 = smul.u32 2, %s21
        %p475 = scmp.lt.s32.totalorder %s474, 3
        %s476 = scalar_select %p475, %s474, 3
        %s477 = smul.addr %s476, 4
        %s478 = scalar_lea.vmem %s3, %s477
        %s479 = smul.u32 2, %s21
        %s480 = sadd.s32 %s21, 1
        %p481 = scmp.lt.s32.totalorder %s480, 0
        %s482 = ssub.s32 0, %s480
        %s483 = scalar_select %p481, %s482, %s480
        %s484 = sand.u32 %s483, 1
        %s485 = ssub.s32 0, %s484
        %s486 = scalar_select %p481, %s485, %s484
        %p487 = scmp.ne.s32.totalorder %s486, 0
        %p488 = scmp.lt.s32.totalorder %s486, 0
        %p489 = pnand %p488, %p487
        %p490 = pneg %p489
        %s491 = sadd.s32 %s486, 2
        %s492 = scalar_select %p490, %s491, %s486
        %s493 = smul.u32 %s492, 2
        %p494 = scmp.lt.s32.totalorder %s493, 3
        %s495 = scalar_select %p494, %s493, 3
        %s496 = smul.addr %s495, 4
        %s497 = scalar_lea.vmem %s4, %s496
        %s498 = sadd.s32 %s21, 1
        %p499 = scmp.lt.s32.totalorder %s498, 0
        %s500 = ssub.s32 0, %s498
        %s501 = scalar_select %p499, %s500, %s498
        %s502 = sand.u32 %s501, 1
        %s503 = ssub.s32 0, %s502
        %s504 = scalar_select %p499, %s503, %s502
        %p505 = scmp.ne.s32.totalorder %s504, 0
        %p506 = scmp.lt.s32.totalorder %s504, 0
        %p507 = pnand %p506, %p505
        %p508 = pneg %p507
        %s509 = sadd.s32 %s504, 2
        %s510 = scalar_select %p508, %s509, %s504
        %s511 = smul.u32 %s510, 2
        %s512 = smul.u32 2, %s21
        %s513 = sld [smem:[#allocation2 + $0x7]]
        %v514 = vld [vmem:[%s441] sm:$0x3]
        %v516 = vlaneseq
        %v517 = vshrl.u32 %v516, 7
        %v518 = vsub.s32 0, %v517
        %v519 = vrot.slane %v514, %v518
        %v520 = vlaneseq
        %v521 = vshrl.u32 %v520, 7
        %v522 = vsub.s32 1, %v521
        %v523 = vrot.slane %v514, %v522
        %v526 = vld [vmem:[%s5] sm:$0xff]
        %v527 = vld [vmem:[%s5 + $0x8] sm:$0xff]
        %v528 = vld [vmem:[%s5 + $0x10] sm:$0xff]
        %v529 = vld [vmem:[%s5 + $0x18] sm:$0xff]
        %531 = vset.pattern.permute.xlu0 0
        %532 = vperm.xlu0 %531, %v526
        %v533 = vpop.permute.xlu0 %532
        %536 = vset.pattern.permute.xlu0 0
        %537 = vperm.xlu0 %536, %v527
        %v538 = vpop.permute.xlu0 %537
        %541 = vset.pattern.permute.xlu0 0
        %542 = vperm.xlu0 %541, %v528
        %v543 = vpop.permute.xlu0 %542
        %546 = vset.pattern.permute.xlu0 0
        %547 = vperm.xlu0 %546, %v529
        %v548 = vpop.permute.xlu0 %547
        %v550 = vmul.f32 %v533, %v519
        %v551 = vmul.f32 %v533, %v523
        %v552 = vmul.f32 %v538, %v519
        %v553 = vmul.f32 %v538, %v523
        %v554 = vmul.f32 %v543, %v519
        %v555 = vmul.f32 %v543, %v523
        %v556 = vmul.f32 %v548, %v519
        %v557 = vmul.f32 %v548, %v523
        %558 = vset.pattern.permute.xlu0 1
        %559 = vperm.xlu0 %558, %v526
        %v560 = vpop.permute.xlu0 %559
        %562 = vset.pattern.permute.xlu0 1
        %563 = vperm.xlu0 %562, %v527
        %v564 = vpop.permute.xlu0 %563
        %566 = vset.pattern.permute.xlu0 1
        %567 = vperm.xlu0 %566, %v528
        %v568 = vpop.permute.xlu0 %567
        %570 = vset.pattern.permute.xlu0 1
        %571 = vperm.xlu0 %570, %v529
        %v572 = vpop.permute.xlu0 %571
        %v574 = vadd.f32 %v550, %v560
        %v575 = vadd.f32 %v551, %v560
        %v576 = vadd.f32 %v552, %v564
        %v577 = vadd.f32 %v553, %v564
        %v578 = vadd.f32 %v554, %v568
        %v579 = vadd.f32 %v555, %v568
        %v580 = vadd.f32 %v556, %v572
        %v581 = vadd.f32 %v557, %v572
        %v582 = vmax.f32 %v574, 0.0
        %v583 = vmax.f32 %v575, 0.0
        %v584 = vmax.f32 %v576, 0.0
        %v585 = vmax.f32 %v577, 0.0
        %v586 = vmax.f32 %v578, 0.0
        %v587 = vmax.f32 %v579, 0.0
        %v588 = vmax.f32 %v580, 0.0
        %v589 = vmax.f32 %v581, 0.0
        %590 = vset.pattern.permute.xlu0 2
        %591 = vperm.xlu0 %590, %v526
        %v592 = vpop.permute.xlu0 %591
        %594 = vset.pattern.permute.xlu0 2
        %595 = vperm.xlu0 %594, %v527
        %v596 = vpop.permute.xlu0 %595
        %598 = vset.pattern.permute.xlu0 2
        %599 = vperm.xlu0 %598, %v528
        %v600 = vpop.permute.xlu0 %599
        %602 = vset.pattern.permute.xlu0 2
        %603 = vperm.xlu0 %602, %v529
        %v604 = vpop.permute.xlu0 %603
        %v606 = vmul.f32 %v592, %v582
        %v607 = vmul.f32 %v592, %v583
        %v608 = vmul.f32 %v596, %v584
        %v609 = vmul.f32 %v596, %v585
        %v610 = vmul.f32 %v600, %v586
        %v611 = vmul.f32 %v600, %v587
        %v612 = vmul.f32 %v604, %v588
        %v613 = vmul.f32 %v604, %v589
        %v614 = vadd.f32 %v606, %v608
        %v615 = vadd.f32 %v607, %v609
        %v616 = vadd.f32 %v610, %v612
        %v617 = vadd.f32 %v611, %v613
        %v618 = vadd.f32 %v614, %v616
        %v619 = vadd.f32 %v615, %v617
        %v620 = vadd.f32 %v618, 0.0
        %v621 = vadd.f32 %v619, 0.0
        %v622 = vld [vmem:[%s5 + $0x20] sm:$0xff]
        %v623 = vld [vmem:[%s5 + $0x28] sm:$0xff]
        %v624 = vld [vmem:[%s5 + $0x30] sm:$0xff]
        %v625 = vld [vmem:[%s5 + $0x38] sm:$0xff]
        %627 = vset.pattern.permute.xlu0 0
        %628 = vperm.xlu0 %627, %v622
        %v629 = vpop.permute.xlu0 %628
        %632 = vset.pattern.permute.xlu0 0
        %633 = vperm.xlu0 %632, %v623
        %v634 = vpop.permute.xlu0 %633
        %637 = vset.pattern.permute.xlu0 0
        %638 = vperm.xlu0 %637, %v624
        %v639 = vpop.permute.xlu0 %638
        %642 = vset.pattern.permute.xlu0 0
        %643 = vperm.xlu0 %642, %v625
        %v644 = vpop.permute.xlu0 %643
        %v646 = vmul.f32 %v629, %v519
        %v647 = vmul.f32 %v629, %v523
        %v648 = vmul.f32 %v634, %v519
        %v649 = vmul.f32 %v634, %v523
        %v650 = vmul.f32 %v639, %v519
        %v651 = vmul.f32 %v639, %v523
        %v652 = vmul.f32 %v644, %v519
        %v653 = vmul.f32 %v644, %v523
        %654 = vset.pattern.permute.xlu0 1
        %655 = vperm.xlu0 %654, %v622
        %v656 = vpop.permute.xlu0 %655
        %658 = vset.pattern.permute.xlu0 1
        %659 = vperm.xlu0 %658, %v623
        %v660 = vpop.permute.xlu0 %659
        %662 = vset.pattern.permute.xlu0 1
        %663 = vperm.xlu0 %662, %v624
        %v664 = vpop.permute.xlu0 %663
        %666 = vset.pattern.permute.xlu0 1
        %667 = vperm.xlu0 %666, %v625
        %v668 = vpop.permute.xlu0 %667
        %v670 = vadd.f32 %v646, %v656
        %v671 = vadd.f32 %v647, %v656
        %v672 = vadd.f32 %v648, %v660
        %v673 = vadd.f32 %v649, %v660
        %v674 = vadd.f32 %v650, %v664
        %v675 = vadd.f32 %v651, %v664
        %v676 = vadd.f32 %v652, %v668
        %v677 = vadd.f32 %v653, %v668
        %v678 = vmax.f32 %v670, 0.0
        %v679 = vmax.f32 %v671, 0.0
        %v680 = vmax.f32 %v672, 0.0
        %v681 = vmax.f32 %v673, 0.0
        %v682 = vmax.f32 %v674, 0.0
        %v683 = vmax.f32 %v675, 0.0
        %v684 = vmax.f32 %v676, 0.0
        %v685 = vmax.f32 %v677, 0.0
        %686 = vset.pattern.permute.xlu0 2
        %687 = vperm.xlu0 %686, %v622
        %v688 = vpop.permute.xlu0 %687
        %690 = vset.pattern.permute.xlu0 2
        %691 = vperm.xlu0 %690, %v623
        %v692 = vpop.permute.xlu0 %691
        %694 = vset.pattern.permute.xlu0 2
        %695 = vperm.xlu0 %694, %v624
        %v696 = vpop.permute.xlu0 %695
        %698 = vset.pattern.permute.xlu0 2
        %699 = vperm.xlu0 %698, %v625
        %v700 = vpop.permute.xlu0 %699
        %v702 = vmul.f32 %v688, %v678
        %v703 = vmul.f32 %v688, %v679
        %v704 = vmul.f32 %v692, %v680
        %v705 = vmul.f32 %v692, %v681
        %v706 = vmul.f32 %v696, %v682
        %v707 = vmul.f32 %v696, %v683
        %v708 = vmul.f32 %v700, %v684
        %v709 = vmul.f32 %v700, %v685
        %v710 = vadd.f32 %v702, %v704
        %v711 = vadd.f32 %v703, %v705
        %v712 = vadd.f32 %v706, %v708
        %v713 = vadd.f32 %v707, %v709
        %v714 = vadd.f32 %v710, %v712
        %v715 = vadd.f32 %v711, %v713
        %v716 = vadd.f32 %v620, %v714
        %v717 = vadd.f32 %v621, %v715
        %v718 = vld [vmem:[%s5 + $0x40] sm:$0xff]
        %v719 = vld [vmem:[%s5 + $0x48] sm:$0xff]
        %v720 = vld [vmem:[%s5 + $0x50] sm:$0xff]
        %v721 = vld [vmem:[%s5 + $0x58] sm:$0xff]
        %723 = vset.pattern.permute.xlu0 0
        %724 = vperm.xlu0 %723, %v718
        %v725 = vpop.permute.xlu0 %724
        %728 = vset.pattern.permute.xlu0 0
        %729 = vperm.xlu0 %728, %v719
        %v730 = vpop.permute.xlu0 %729
        %733 = vset.pattern.permute.xlu0 0
        %734 = vperm.xlu0 %733, %v720
        %v735 = vpop.permute.xlu0 %734
        %738 = vset.pattern.permute.xlu0 0
        %739 = vperm.xlu0 %738, %v721
        %v740 = vpop.permute.xlu0 %739
        %v742 = vmul.f32 %v725, %v519
        %v743 = vmul.f32 %v725, %v523
        %v744 = vmul.f32 %v730, %v519
        %v745 = vmul.f32 %v730, %v523
        %v746 = vmul.f32 %v735, %v519
        %v747 = vmul.f32 %v735, %v523
        %v748 = vmul.f32 %v740, %v519
        %v749 = vmul.f32 %v740, %v523
        %750 = vset.pattern.permute.xlu0 1
        %751 = vperm.xlu0 %750, %v718
        %v752 = vpop.permute.xlu0 %751
        %754 = vset.pattern.permute.xlu0 1
        %755 = vperm.xlu0 %754, %v719
        %v756 = vpop.permute.xlu0 %755
        %758 = vset.pattern.permute.xlu0 1
        %759 = vperm.xlu0 %758, %v720
        %v760 = vpop.permute.xlu0 %759
        %762 = vset.pattern.permute.xlu0 1
        %763 = vperm.xlu0 %762, %v721
        %v764 = vpop.permute.xlu0 %763
        %v766 = vadd.f32 %v742, %v752
        %v767 = vadd.f32 %v743, %v752
        %v768 = vadd.f32 %v744, %v756
        %v769 = vadd.f32 %v745, %v756
        %v770 = vadd.f32 %v746, %v760
        %v771 = vadd.f32 %v747, %v760
        %v772 = vadd.f32 %v748, %v764
        %v773 = vadd.f32 %v749, %v764
        %v774 = vmax.f32 %v766, 0.0
        %v775 = vmax.f32 %v767, 0.0
        %v776 = vmax.f32 %v768, 0.0
        %v777 = vmax.f32 %v769, 0.0
        %v778 = vmax.f32 %v770, 0.0
        %v779 = vmax.f32 %v771, 0.0
        %v780 = vmax.f32 %v772, 0.0
        %v781 = vmax.f32 %v773, 0.0
        %782 = vset.pattern.permute.xlu0 2
        %783 = vperm.xlu0 %782, %v718
        %v784 = vpop.permute.xlu0 %783
        %786 = vset.pattern.permute.xlu0 2
        %787 = vperm.xlu0 %786, %v719
        %v788 = vpop.permute.xlu0 %787
        %790 = vset.pattern.permute.xlu0 2
        %791 = vperm.xlu0 %790, %v720
        %v792 = vpop.permute.xlu0 %791
        %794 = vset.pattern.permute.xlu0 2
        %795 = vperm.xlu0 %794, %v721
        %v796 = vpop.permute.xlu0 %795
        %v798 = vmul.f32 %v784, %v774
        %v799 = vmul.f32 %v784, %v775
        %v800 = vmul.f32 %v788, %v776
        %v801 = vmul.f32 %v788, %v777
        %v802 = vmul.f32 %v792, %v778
        %v803 = vmul.f32 %v792, %v779
        %v804 = vmul.f32 %v796, %v780
        %v805 = vmul.f32 %v796, %v781
        %v806 = vadd.f32 %v798, %v800
        %v807 = vadd.f32 %v799, %v801
        %v808 = vadd.f32 %v802, %v804
        %v809 = vadd.f32 %v803, %v805
        %v810 = vadd.f32 %v806, %v808
        %v811 = vadd.f32 %v807, %v809
        %v812 = vadd.f32 %v716, %v810
        %v813 = vadd.f32 %v717, %v811
        %v814 = vld [vmem:[%s5 + $0x60] sm:$0xff]
        %v815 = vld [vmem:[%s5 + $0x68] sm:$0xff]
        %v816 = vld [vmem:[%s5 + $0x70] sm:$0xff]
        %v817 = vld [vmem:[%s5 + $0x78] sm:$0xff]
        %819 = vset.pattern.permute.xlu0 0
        %820 = vperm.xlu0 %819, %v814
        %v821 = vpop.permute.xlu0 %820
        %824 = vset.pattern.permute.xlu0 0
        %825 = vperm.xlu0 %824, %v815
        %v826 = vpop.permute.xlu0 %825
        %829 = vset.pattern.permute.xlu0 0
        %830 = vperm.xlu0 %829, %v816
        %v831 = vpop.permute.xlu0 %830
        %834 = vset.pattern.permute.xlu0 0
        %835 = vperm.xlu0 %834, %v817
        %v836 = vpop.permute.xlu0 %835
        %v838 = vmul.f32 %v821, %v519
        %v839 = vmul.f32 %v821, %v523
        %v840 = vmul.f32 %v826, %v519
        %v841 = vmul.f32 %v826, %v523
        %v842 = vmul.f32 %v831, %v519
        %v843 = vmul.f32 %v831, %v523
        %v844 = vmul.f32 %v836, %v519
        %v845 = vmul.f32 %v836, %v523
        %846 = vset.pattern.permute.xlu0 1
        %847 = vperm.xlu0 %846, %v814
        %v848 = vpop.permute.xlu0 %847
        %850 = vset.pattern.permute.xlu0 1
        %851 = vperm.xlu0 %850, %v815
        %v852 = vpop.permute.xlu0 %851
        %854 = vset.pattern.permute.xlu0 1
        %855 = vperm.xlu0 %854, %v816
        %v856 = vpop.permute.xlu0 %855
        %858 = vset.pattern.permute.xlu0 1
        %859 = vperm.xlu0 %858, %v817
        %v860 = vpop.permute.xlu0 %859
        %v862 = vadd.f32 %v838, %v848
        %v863 = vadd.f32 %v839, %v848
        %v864 = vadd.f32 %v840, %v852
        %v865 = vadd.f32 %v841, %v852
        %v866 = vadd.f32 %v842, %v856
        %v867 = vadd.f32 %v843, %v856
        %v868 = vadd.f32 %v844, %v860
        %v869 = vadd.f32 %v845, %v860
        %v870 = vmax.f32 %v862, 0.0
        %v871 = vmax.f32 %v863, 0.0
        %v872 = vmax.f32 %v864, 0.0
        %v873 = vmax.f32 %v865, 0.0
        %v874 = vmax.f32 %v866, 0.0
        %v875 = vmax.f32 %v867, 0.0
        %v876 = vmax.f32 %v868, 0.0
        %v877 = vmax.f32 %v869, 0.0
        %878 = vset.pattern.permute.xlu0 2
        %879 = vperm.xlu0 %878, %v814
        %v880 = vpop.permute.xlu0 %879
        %882 = vset.pattern.permute.xlu0 2
        %883 = vperm.xlu0 %882, %v815
        %v884 = vpop.permute.xlu0 %883
        %886 = vset.pattern.permute.xlu0 2
        %887 = vperm.xlu0 %886, %v816
        %v888 = vpop.permute.xlu0 %887
        %890 = vset.pattern.permute.xlu0 2
        %891 = vperm.xlu0 %890, %v817
        %v892 = vpop.permute.xlu0 %891
        %v894 = vmul.f32 %v880, %v870
        %v895 = vmul.f32 %v880, %v871
        %v896 = vmul.f32 %v884, %v872
        %v897 = vmul.f32 %v884, %v873
        %v898 = vmul.f32 %v888, %v874
        %v899 = vmul.f32 %v888, %v875
        %v900 = vmul.f32 %v892, %v876
        %v901 = vmul.f32 %v892, %v877
        %v902 = vadd.f32 %v894, %v896
        %v903 = vadd.f32 %v895, %v897
        %v904 = vadd.f32 %v898, %v900
        %v905 = vadd.f32 %v899, %v901
        %v906 = vadd.f32 %v902, %v904
        %v907 = vadd.f32 %v903, %v905
        %v908 = vadd.f32 %v812, %v906
        %v909 = vadd.f32 %v813, %v907
        %v910 = vld [vmem:[%s5 + $0x80] sm:$0xff]
        %v911 = vld [vmem:[%s5 + $0x88] sm:$0xff]
        %v912 = vld [vmem:[%s5 + $0x90] sm:$0xff]
        %v913 = vld [vmem:[%s5 + $0x98] sm:$0xff]
        %915 = vset.pattern.permute.xlu0 0
        %916 = vperm.xlu0 %915, %v910
        %v917 = vpop.permute.xlu0 %916
        %920 = vset.pattern.permute.xlu0 0
        %921 = vperm.xlu0 %920, %v911
        %v922 = vpop.permute.xlu0 %921
        %925 = vset.pattern.permute.xlu0 0
        %926 = vperm.xlu0 %925, %v912
        %v927 = vpop.permute.xlu0 %926
        %930 = vset.pattern.permute.xlu0 0
        %931 = vperm.xlu0 %930, %v913
        %v932 = vpop.permute.xlu0 %931
        %v934 = vmul.f32 %v917, %v519
        %v935 = vmul.f32 %v917, %v523
        %v936 = vmul.f32 %v922, %v519
        %v937 = vmul.f32 %v922, %v523
        %v938 = vmul.f32 %v927, %v519
        %v939 = vmul.f32 %v927, %v523
        %v940 = vmul.f32 %v932, %v519
        %v941 = vmul.f32 %v932, %v523
        %942 = vset.pattern.permute.xlu0 1
        %943 = vperm.xlu0 %942, %v910
        %v944 = vpop.permute.xlu0 %943
        %946 = vset.pattern.permute.xlu0 1
        %947 = vperm.xlu0 %946, %v911
        %v948 = vpop.permute.xlu0 %947
        %950 = vset.pattern.permute.xlu0 1
        %951 = vperm.xlu0 %950, %v912
        %v952 = vpop.permute.xlu0 %951
        %954 = vset.pattern.permute.xlu0 1
        %955 = vperm.xlu0 %954, %v913
        %v956 = vpop.permute.xlu0 %955
        %v958 = vadd.f32 %v934, %v944
        %v959 = vadd.f32 %v935, %v944
        %v960 = vadd.f32 %v936, %v948
        %v961 = vadd.f32 %v937, %v948
        %v962 = vadd.f32 %v938, %v952
        %v963 = vadd.f32 %v939, %v952
        %v964 = vadd.f32 %v940, %v956
        %v965 = vadd.f32 %v941, %v956
        %v966 = vmax.f32 %v958, 0.0
        %v967 = vmax.f32 %v959, 0.0
        %v968 = vmax.f32 %v960, 0.0
        %v969 = vmax.f32 %v961, 0.0
        %v970 = vmax.f32 %v962, 0.0
        %v971 = vmax.f32 %v963, 0.0
        %v972 = vmax.f32 %v964, 0.0
        %v973 = vmax.f32 %v965, 0.0
        %974 = vset.pattern.permute.xlu0 2
        %975 = vperm.xlu0 %974, %v910
        %v976 = vpop.permute.xlu0 %975
        %978 = vset.pattern.permute.xlu0 2
        %979 = vperm.xlu0 %978, %v911
        %v980 = vpop.permute.xlu0 %979
        %982 = vset.pattern.permute.xlu0 2
        %983 = vperm.xlu0 %982, %v912
        %v984 = vpop.permute.xlu0 %983
        %986 = vset.pattern.permute.xlu0 2
        %987 = vperm.xlu0 %986, %v913
        %v988 = vpop.permute.xlu0 %987
        %v990 = vmul.f32 %v976, %v966
        %v991 = vmul.f32 %v976, %v967
        %v992 = vmul.f32 %v980, %v968
        %v993 = vmul.f32 %v980, %v969
        %v994 = vmul.f32 %v984, %v970
        %v995 = vmul.f32 %v984, %v971
        %v996 = vmul.f32 %v988, %v972
        %v997 = vmul.f32 %v988, %v973
        %v998 = vadd.f32 %v990, %v992
        %v999 = vadd.f32 %v991, %v993
        %v1000 = vadd.f32 %v994, %v996
        %v1001 = vadd.f32 %v995, %v997
        %v1002 = vadd.f32 %v998, %v1000
        %v1003 = vadd.f32 %v999, %v1001
        %v1004 = vadd.f32 %v908, %v1002
        %v1005 = vadd.f32 %v909, %v1003
        %v1006 = vld [vmem:[%s5 + $0xa0] sm:$0xff]
        %v1007 = vld [vmem:[%s5 + $0xa8] sm:$0xff]
        %v1008 = vld [vmem:[%s5 + $0xb0] sm:$0xff]
        %v1009 = vld [vmem:[%s5 + $0xb8] sm:$0xff]
        %1011 = vset.pattern.permute.xlu0 0
        %1012 = vperm.xlu0 %1011, %v1006
        %v1013 = vpop.permute.xlu0 %1012
        %1016 = vset.pattern.permute.xlu0 0
        %1017 = vperm.xlu0 %1016, %v1007
        %v1018 = vpop.permute.xlu0 %1017
        %1021 = vset.pattern.permute.xlu0 0
        %1022 = vperm.xlu0 %1021, %v1008
        %v1023 = vpop.permute.xlu0 %1022
        %1026 = vset.pattern.permute.xlu0 0
        %1027 = vperm.xlu0 %1026, %v1009
        %v1028 = vpop.permute.xlu0 %1027
        %v1030 = vmul.f32 %v1013, %v519
        %v1031 = vmul.f32 %v1013, %v523
        %v1032 = vmul.f32 %v1018, %v519
        %v1033 = vmul.f32 %v1018, %v523
        %v1034 = vmul.f32 %v1023, %v519
        %v1035 = vmul.f32 %v1023, %v523
        %v1036 = vmul.f32 %v1028, %v519
        %v1037 = vmul.f32 %v1028, %v523
        %1038 = vset.pattern.permute.xlu0 1
        %1039 = vperm.xlu0 %1038, %v1006
        %v1040 = vpop.permute.xlu0 %1039
        %1042 = vset.pattern.permute.xlu0 1
        %1043 = vperm.xlu0 %1042, %v1007
        %v1044 = vpop.permute.xlu0 %1043
        %1046 = vset.pattern.permute.xlu0 1
        %1047 = vperm.xlu0 %1046, %v1008
        %v1048 = vpop.permute.xlu0 %1047
        %1050 = vset.pattern.permute.xlu0 1
        %1051 = vperm.xlu0 %1050, %v1009
        %v1052 = vpop.permute.xlu0 %1051
        %v1054 = vadd.f32 %v1030, %v1040
        %v1055 = vadd.f32 %v1031, %v1040
        %v1056 = vadd.f32 %v1032, %v1044
        %v1057 = vadd.f32 %v1033, %v1044
        %v1058 = vadd.f32 %v1034, %v1048
        %v1059 = vadd.f32 %v1035, %v1048
        %v1060 = vadd.f32 %v1036, %v1052
        %v1061 = vadd.f32 %v1037, %v1052
        %v1062 = vmax.f32 %v1054, 0.0
        %v1063 = vmax.f32 %v1055, 0.0
        %v1064 = vmax.f32 %v1056, 0.0
        %v1065 = vmax.f32 %v1057, 0.0
        %v1066 = vmax.f32 %v1058, 0.0
        %v1067 = vmax.f32 %v1059, 0.0
        %v1068 = vmax.f32 %v1060, 0.0
        %v1069 = vmax.f32 %v1061, 0.0
        %1070 = vset.pattern.permute.xlu0 2
        %1071 = vperm.xlu0 %1070, %v1006
        %v1072 = vpop.permute.xlu0 %1071
        %1074 = vset.pattern.permute.xlu0 2
        %1075 = vperm.xlu0 %1074, %v1007
        %v1076 = vpop.permute.xlu0 %1075
        %1078 = vset.pattern.permute.xlu0 2
        %1079 = vperm.xlu0 %1078, %v1008
        %v1080 = vpop.permute.xlu0 %1079
        %1082 = vset.pattern.permute.xlu0 2
        %1083 = vperm.xlu0 %1082, %v1009
        %v1084 = vpop.permute.xlu0 %1083
        %v1086 = vmul.f32 %v1072, %v1062
        %v1087 = vmul.f32 %v1072, %v1063
        %v1088 = vmul.f32 %v1076, %v1064
        %v1089 = vmul.f32 %v1076, %v1065
        %v1090 = vmul.f32 %v1080, %v1066
        %v1091 = vmul.f32 %v1080, %v1067
        %v1092 = vmul.f32 %v1084, %v1068
        %v1093 = vmul.f32 %v1084, %v1069
        %v1094 = vadd.f32 %v1086, %v1088
        %v1095 = vadd.f32 %v1087, %v1089
        %v1096 = vadd.f32 %v1090, %v1092
        %v1097 = vadd.f32 %v1091, %v1093
        %v1098 = vadd.f32 %v1094, %v1096
        %v1099 = vadd.f32 %v1095, %v1097
        %v1100 = vadd.f32 %v1004, %v1098
        %v1101 = vadd.f32 %v1005, %v1099
        %v1102 = vld [vmem:[%s5 + $0xc0] sm:$0xff]
        %v1103 = vld [vmem:[%s5 + $0xc8] sm:$0xff]
        %v1104 = vld [vmem:[%s5 + $0xd0] sm:$0xff]
        %v1105 = vld [vmem:[%s5 + $0xd8] sm:$0xff]
        %1107 = vset.pattern.permute.xlu0 0
        %1108 = vperm.xlu0 %1107, %v1102
        %v1109 = vpop.permute.xlu0 %1108
        %1112 = vset.pattern.permute.xlu0 0
        %1113 = vperm.xlu0 %1112, %v1103
        %v1114 = vpop.permute.xlu0 %1113
        %1117 = vset.pattern.permute.xlu0 0
        %1118 = vperm.xlu0 %1117, %v1104
        %v1119 = vpop.permute.xlu0 %1118
        %1122 = vset.pattern.permute.xlu0 0
        %1123 = vperm.xlu0 %1122, %v1105
        %v1124 = vpop.permute.xlu0 %1123
        %v1126 = vmul.f32 %v1109, %v519
        %v1127 = vmul.f32 %v1109, %v523
        %v1128 = vmul.f32 %v1114, %v519
        %v1129 = vmul.f32 %v1114, %v523
        %v1130 = vmul.f32 %v1119, %v519
        %v1131 = vmul.f32 %v1119, %v523
        %v1132 = vmul.f32 %v1124, %v519
        %v1133 = vmul.f32 %v1124, %v523
        %1134 = vset.pattern.permute.xlu0 1
        %1135 = vperm.xlu0 %1134, %v1102
        %v1136 = vpop.permute.xlu0 %1135
        %1138 = vset.pattern.permute.xlu0 1
        %1139 = vperm.xlu0 %1138, %v1103
        %v1140 = vpop.permute.xlu0 %1139
        %1142 = vset.pattern.permute.xlu0 1
        %1143 = vperm.xlu0 %1142, %v1104
        %v1144 = vpop.permute.xlu0 %1143
        %1146 = vset.pattern.permute.xlu0 1
        %1147 = vperm.xlu0 %1146, %v1105
        %v1148 = vpop.permute.xlu0 %1147
        %v1150 = vadd.f32 %v1126, %v1136
        %v1151 = vadd.f32 %v1127, %v1136
        %v1152 = vadd.f32 %v1128, %v1140
        %v1153 = vadd.f32 %v1129, %v1140
        %v1154 = vadd.f32 %v1130, %v1144
        %v1155 = vadd.f32 %v1131, %v1144
        %v1156 = vadd.f32 %v1132, %v1148
        %v1157 = vadd.f32 %v1133, %v1148
        %v1158 = vmax.f32 %v1150, 0.0
        %v1159 = vmax.f32 %v1151, 0.0
        %v1160 = vmax.f32 %v1152, 0.0
        %v1161 = vmax.f32 %v1153, 0.0
        %v1162 = vmax.f32 %v1154, 0.0
        %v1163 = vmax.f32 %v1155, 0.0
        %v1164 = vmax.f32 %v1156, 0.0
        %v1165 = vmax.f32 %v1157, 0.0
        %1166 = vset.pattern.permute.xlu0 2
        %1167 = vperm.xlu0 %1166, %v1102
        %v1168 = vpop.permute.xlu0 %1167
        %1170 = vset.pattern.permute.xlu0 2
        %1171 = vperm.xlu0 %1170, %v1103
        %v1172 = vpop.permute.xlu0 %1171
        %1174 = vset.pattern.permute.xlu0 2
        %1175 = vperm.xlu0 %1174, %v1104
        %v1176 = vpop.permute.xlu0 %1175
        %1178 = vset.pattern.permute.xlu0 2
        %1179 = vperm.xlu0 %1178, %v1105
        %v1180 = vpop.permute.xlu0 %1179
        %v1182 = vmul.f32 %v1168, %v1158
        %v1183 = vmul.f32 %v1168, %v1159
        %v1184 = vmul.f32 %v1172, %v1160
        %v1185 = vmul.f32 %v1172, %v1161
        %v1186 = vmul.f32 %v1176, %v1162
        %v1187 = vmul.f32 %v1176, %v1163
        %v1188 = vmul.f32 %v1180, %v1164
        %v1189 = vmul.f32 %v1180, %v1165
        %v1190 = vadd.f32 %v1182, %v1184
        %v1191 = vadd.f32 %v1183, %v1185
        %v1192 = vadd.f32 %v1186, %v1188
        %v1193 = vadd.f32 %v1187, %v1189
        %v1194 = vadd.f32 %v1190, %v1192
        %v1195 = vadd.f32 %v1191, %v1193
        %v1196 = vadd.f32 %v1100, %v1194
        %v1197 = vadd.f32 %v1101, %v1195
        %v1198 = vld [vmem:[%s5 + $0xe0] sm:$0xff]
        %v1199 = vld [vmem:[%s5 + $0xe8] sm:$0xff]
        %v1200 = vld [vmem:[%s5 + $0xf0] sm:$0xff]
        %v1201 = vld [vmem:[%s5 + $0xf8] sm:$0xff]
        %1203 = vset.pattern.permute.xlu0 0
        %1204 = vperm.xlu0 %1203, %v1198
        %v1205 = vpop.permute.xlu0 %1204
        %1208 = vset.pattern.permute.xlu0 0
        %1209 = vperm.xlu0 %1208, %v1199
        %v1210 = vpop.permute.xlu0 %1209
        %1213 = vset.pattern.permute.xlu0 0
        %1214 = vperm.xlu0 %1213, %v1200
        %v1215 = vpop.permute.xlu0 %1214
        %1218 = vset.pattern.permute.xlu0 0
        %1219 = vperm.xlu0 %1218, %v1201
        %v1220 = vpop.permute.xlu0 %1219
        %v1222 = vmul.f32 %v1205, %v519
        %v1223 = vmul.f32 %v1205, %v523
        %v1224 = vmul.f32 %v1210, %v519
        %v1225 = vmul.f32 %v1210, %v523
        %v1226 = vmul.f32 %v1215, %v519
        %v1227 = vmul.f32 %v1215, %v523
        %v1228 = vmul.f32 %v1220, %v519
        %v1229 = vmul.f32 %v1220, %v523
        %1230 = vset.pattern.permute.xlu0 1
        %1231 = vperm.xlu0 %1230, %v1198
        %v1232 = vpop.permute.xlu0 %1231
        %1234 = vset.pattern.permute.xlu0 1
        %1235 = vperm.xlu0 %1234, %v1199
        %v1236 = vpop.permute.xlu0 %1235
        %1238 = vset.pattern.permute.xlu0 1
        %1239 = vperm.xlu0 %1238, %v1200
        %v1240 = vpop.permute.xlu0 %1239
        %1242 = vset.pattern.permute.xlu0 1
        %1243 = vperm.xlu0 %1242, %v1201
        %v1244 = vpop.permute.xlu0 %1243
        %v1246 = vadd.f32 %v1222, %v1232
        %v1247 = vadd.f32 %v1223, %v1232
        %v1248 = vadd.f32 %v1224, %v1236
        %v1249 = vadd.f32 %v1225, %v1236
        %v1250 = vadd.f32 %v1226, %v1240
        %v1251 = vadd.f32 %v1227, %v1240
        %v1252 = vadd.f32 %v1228, %v1244
        %v1253 = vadd.f32 %v1229, %v1244
        %v1254 = vmax.f32 %v1246, 0.0
        %v1255 = vmax.f32 %v1247, 0.0
        %v1256 = vmax.f32 %v1248, 0.0
        %v1257 = vmax.f32 %v1249, 0.0
        %v1258 = vmax.f32 %v1250, 0.0
        %v1259 = vmax.f32 %v1251, 0.0
        %v1260 = vmax.f32 %v1252, 0.0
        %v1261 = vmax.f32 %v1253, 0.0
        %1262 = vset.pattern.permute.xlu0 2
        %1263 = vperm.xlu0 %1262, %v1198
        %v1264 = vpop.permute.xlu0 %1263
        %1266 = vset.pattern.permute.xlu0 2
        %1267 = vperm.xlu0 %1266, %v1199
        %v1268 = vpop.permute.xlu0 %1267
        %1270 = vset.pattern.permute.xlu0 2
        %1271 = vperm.xlu0 %1270, %v1200
        %v1272 = vpop.permute.xlu0 %1271
        %1274 = vset.pattern.permute.xlu0 2
        %1275 = vperm.xlu0 %1274, %v1201
        %v1276 = vpop.permute.xlu0 %1275
        %v1278 = vmul.f32 %v1264, %v1254
        %v1279 = vmul.f32 %v1264, %v1255
        %v1280 = vmul.f32 %v1268, %v1256
        %v1281 = vmul.f32 %v1268, %v1257
        %v1282 = vmul.f32 %v1272, %v1258
        %v1283 = vmul.f32 %v1272, %v1259
        %v1284 = vmul.f32 %v1276, %v1260
        %v1285 = vmul.f32 %v1276, %v1261
        %v1286 = vadd.f32 %v1278, %v1280
        %v1287 = vadd.f32 %v1279, %v1281
        %v1288 = vadd.f32 %v1282, %v1284
        %v1289 = vadd.f32 %v1283, %v1285
        %v1290 = vadd.f32 %v1286, %v1288
        %v1291 = vadd.f32 %v1287, %v1289
        %v1292 = vadd.f32 %v1196, %v1290
        %v1293 = vadd.f32 %v1197, %v1291
        %v1294 = vrot.slane %v1292, 4
        %v1295 = vadd.f32 %v1292, %v1294
        %v1296 = vrot.slane %v1295, 2
        %v1297 = vadd.f32 %v1295, %v1296
        %v1298 = vrot.slane %v1297, 1
        %v1299 = vadd.f32 %v1297, %v1298
        %v1300 = vrot.slane %v1293, 4
        %v1301 = vadd.f32 %v1293, %v1300
        %v1302 = vrot.slane %v1301, 2
        %v1303 = vadd.f32 %v1301, %v1302
        %v1304 = vrot.slane %v1303, 1
        %v1305 = vadd.f32 %v1303, %v1304
        %v1306 = vstv %s513
        %v1307 = vadd.f32 %v1299, %v1306
        %v1308 = vadd.f32 %v1305, %v1306
        %v1309 = vld [vmem:[%s459] sm:$0x1]
        %v1311 = vlaneseq
        %v1312 = vshrl.u32 %v1311, 7
        %v1313 = vsub.s32 0, %v1312
        %v1314 = vrot.slane %v1309, %v1313
        %v1316 = vmul.f32 %v533, %v1314
        %v1317 = vmul.f32 %v538, %v1314
        %v1318 = vmul.f32 %v543, %v1314
        %v1319 = vmul.f32 %v548, %v1314
        %v1320 = vadd.f32 %v1316, %v560
        %v1321 = vadd.f32 %v1317, %v564
        %v1322 = vadd.f32 %v1318, %v568
        %v1323 = vadd.f32 %v1319, %v572
        %v1324 = vmax.f32 %v1320, 0.0
        %v1325 = vmax.f32 %v1321, 0.0
        %v1326 = vmax.f32 %v1322, 0.0
        %v1327 = vmax.f32 %v1323, 0.0
        %v1328 = vmul.f32 %v592, %v1324
        %v1329 = vmul.f32 %v596, %v1325
        %v1330 = vmul.f32 %v600, %v1326
        %v1331 = vmul.f32 %v604, %v1327
        %v1332 = vadd.f32 %v1328, %v1329
        %v1333 = vadd.f32 %v1330, %v1331
        %v1334 = vadd.f32 %v1332, %v1333
        %v1335 = vadd.f32 %v1334, 0.0
        %v1336 = vmul.f32 %v629, %v1314
        %v1337 = vmul.f32 %v634, %v1314
        %v1338 = vmul.f32 %v639, %v1314
        %v1339 = vmul.f32 %v644, %v1314
        %v1340 = vadd.f32 %v1336, %v656
        %v1341 = vadd.f32 %v1337, %v660
        %v1342 = vadd.f32 %v1338, %v664
        %v1343 = vadd.f32 %v1339, %v668
        %v1344 = vmax.f32 %v1340, 0.0
        %v1345 = vmax.f32 %v1341, 0.0
        %v1346 = vmax.f32 %v1342, 0.0
        %v1347 = vmax.f32 %v1343, 0.0
        %v1348 = vmul.f32 %v688, %v1344
        %v1349 = vmul.f32 %v692, %v1345
        %v1350 = vmul.f32 %v696, %v1346
        %v1351 = vmul.f32 %v700, %v1347
        %v1352 = vadd.f32 %v1348, %v1349
        %v1353 = vadd.f32 %v1350, %v1351
        %v1354 = vadd.f32 %v1352, %v1353
        %v1355 = vadd.f32 %v1335, %v1354
        %v1356 = vmul.f32 %v725, %v1314
        %v1357 = vmul.f32 %v730, %v1314
        %v1358 = vmul.f32 %v735, %v1314
        %v1359 = vmul.f32 %v740, %v1314
        %v1360 = vadd.f32 %v1356, %v752
        %v1361 = vadd.f32 %v1357, %v756
        %v1362 = vadd.f32 %v1358, %v760
        %v1363 = vadd.f32 %v1359, %v764
        %v1364 = vmax.f32 %v1360, 0.0
        %v1365 = vmax.f32 %v1361, 0.0
        %v1366 = vmax.f32 %v1362, 0.0
        %v1367 = vmax.f32 %v1363, 0.0
        %v1368 = vmul.f32 %v784, %v1364
        %v1369 = vmul.f32 %v788, %v1365
        %v1370 = vmul.f32 %v792, %v1366
        %v1371 = vmul.f32 %v796, %v1367
        %v1372 = vadd.f32 %v1368, %v1369
        %v1373 = vadd.f32 %v1370, %v1371
        %v1374 = vadd.f32 %v1372, %v1373
        %v1375 = vadd.f32 %v1355, %v1374
        %v1376 = vmul.f32 %v821, %v1314
        %v1377 = vmul.f32 %v826, %v1314
        %v1378 = vmul.f32 %v831, %v1314
        %v1379 = vmul.f32 %v836, %v1314
        %v1380 = vadd.f32 %v1376, %v848
        %v1381 = vadd.f32 %v1377, %v852
        %v1382 = vadd.f32 %v1378, %v856
        %v1383 = vadd.f32 %v1379, %v860
        %v1384 = vmax.f32 %v1380, 0.0
        %v1385 = vmax.f32 %v1381, 0.0
        %v1386 = vmax.f32 %v1382, 0.0
        %v1387 = vmax.f32 %v1383, 0.0
        %v1388 = vmul.f32 %v880, %v1384
        %v1389 = vmul.f32 %v884, %v1385
        %v1390 = vmul.f32 %v888, %v1386
        %v1391 = vmul.f32 %v892, %v1387
        %v1392 = vadd.f32 %v1388, %v1389
        %v1393 = vadd.f32 %v1390, %v1391
        %v1394 = vadd.f32 %v1392, %v1393
        %v1395 = vadd.f32 %v1375, %v1394
        %v1396 = vmul.f32 %v917, %v1314
        %v1397 = vmul.f32 %v922, %v1314
        %v1398 = vmul.f32 %v927, %v1314
        %v1399 = vmul.f32 %v932, %v1314
        %v1400 = vadd.f32 %v1396, %v944
        %v1401 = vadd.f32 %v1397, %v948
        %v1402 = vadd.f32 %v1398, %v952
        %v1403 = vadd.f32 %v1399, %v956
        %v1404 = vmax.f32 %v1400, 0.0
        %v1405 = vmax.f32 %v1401, 0.0
        %v1406 = vmax.f32 %v1402, 0.0
        %v1407 = vmax.f32 %v1403, 0.0
        %v1408 = vmul.f32 %v976, %v1404
        %v1409 = vmul.f32 %v980, %v1405
        %v1410 = vmul.f32 %v984, %v1406
        %v1411 = vmul.f32 %v988, %v1407
        %v1412 = vadd.f32 %v1408, %v1409
        %v1413 = vadd.f32 %v1410, %v1411
        %v1414 = vadd.f32 %v1412, %v1413
        %v1415 = vadd.f32 %v1395, %v1414
        %v1416 = vmul.f32 %v1013, %v1314
        %v1417 = vmul.f32 %v1018, %v1314
        %v1418 = vmul.f32 %v1023, %v1314
        %v1419 = vmul.f32 %v1028, %v1314
        %v1420 = vadd.f32 %v1416, %v1040
        %v1421 = vadd.f32 %v1417, %v1044
        %v1422 = vadd.f32 %v1418, %v1048
        %v1423 = vadd.f32 %v1419, %v1052
        %v1424 = vmax.f32 %v1420, 0.0
        %v1425 = vmax.f32 %v1421, 0.0
        %v1426 = vmax.f32 %v1422, 0.0
        %v1427 = vmax.f32 %v1423, 0.0
        %v1428 = vmul.f32 %v1072, %v1424
        %v1429 = vmul.f32 %v1076, %v1425
        %v1430 = vmul.f32 %v1080, %v1426
        %v1431 = vmul.f32 %v1084, %v1427
        %v1432 = vadd.f32 %v1428, %v1429
        %v1433 = vadd.f32 %v1430, %v1431
        %v1434 = vadd.f32 %v1432, %v1433
        %v1435 = vadd.f32 %v1415, %v1434
        %v1436 = vmul.f32 %v1109, %v1314
        %v1437 = vmul.f32 %v1114, %v1314
        %v1438 = vmul.f32 %v1119, %v1314
        %v1439 = vmul.f32 %v1124, %v1314
        %v1440 = vadd.f32 %v1436, %v1136
        %v1441 = vadd.f32 %v1437, %v1140
        %v1442 = vadd.f32 %v1438, %v1144
        %v1443 = vadd.f32 %v1439, %v1148
        %v1444 = vmax.f32 %v1440, 0.0
        %v1445 = vmax.f32 %v1441, 0.0
        %v1446 = vmax.f32 %v1442, 0.0
        %v1447 = vmax.f32 %v1443, 0.0
        %v1448 = vmul.f32 %v1168, %v1444
        %v1449 = vmul.f32 %v1172, %v1445
        %v1450 = vmul.f32 %v1176, %v1446
        %v1451 = vmul.f32 %v1180, %v1447
        %v1452 = vadd.f32 %v1448, %v1449
        %v1453 = vadd.f32 %v1450, %v1451
        %v1454 = vadd.f32 %v1452, %v1453
        %v1455 = vadd.f32 %v1435, %v1454
        %v1456 = vmul.f32 %v1205, %v1314
        %v1457 = vmul.f32 %v1210, %v1314
        %v1458 = vmul.f32 %v1215, %v1314
        %v1459 = vmul.f32 %v1220, %v1314
        %v1460 = vadd.f32 %v1456, %v1232
        %v1461 = vadd.f32 %v1457, %v1236
        %v1462 = vadd.f32 %v1458, %v1240
        %v1463 = vadd.f32 %v1459, %v1244
        %v1464 = vmax.f32 %v1460, 0.0
        %v1465 = vmax.f32 %v1461, 0.0
        %v1466 = vmax.f32 %v1462, 0.0
        %v1467 = vmax.f32 %v1463, 0.0
        %v1468 = vmul.f32 %v1264, %v1464
        %v1469 = vmul.f32 %v1268, %v1465
        %v1470 = vmul.f32 %v1272, %v1466
        %v1471 = vmul.f32 %v1276, %v1467
        %v1472 = vadd.f32 %v1468, %v1469
        %v1473 = vadd.f32 %v1470, %v1471
        %v1474 = vadd.f32 %v1472, %v1473
        %v1475 = vadd.f32 %v1455, %v1474
        %v1476 = vrot.slane %v1475, 4
        %v1477 = vadd.f32 %v1475, %v1476
        %v1478 = vrot.slane %v1477, 2
        %v1479 = vadd.f32 %v1477, %v1478
        %v1480 = vrot.slane %v1479, 1
        %v1481 = vadd.f32 %v1479, %v1480
        %v1482 = vadd.f32 %v1481, %v1306
        %v1483 = vld [vmem:[%s478] sm:$0xff]
        %v1484 = vld [vmem:[%s497] sm:$0xf]
        %v1485 = vlaneseq
        %v1486 = vand.u32 %v1485, 127
        %v1487 = vadd.s32 %v1486, 128
        %vm1488 = vcmp.lt.s32.totalorder %v1486, 255
        %vm1489 = vcmp.lt.s32.totalorder %v1487, 255
        %vm1490 = vcmp.lt.s32.totalorder %v1486, 254
        %vm1491 = vcmp.lt.s32.totalorder %v1487, 254
        %vm1492 = vcmp.lt.s32.totalorder %v1486, 253
        %vm1493 = vcmp.lt.s32.totalorder %v1487, 253
        %v1495 = vcombine.high %v1483, %v1483
        %1497 = vrot.lane.b32.xlu0 %v1483, 127
        %v1498 = vpop.permute.xlu0 %1497
        %1499 = vrot.lane.b32.xlu0 %v1495, 127
        %v1500 = vpop.permute.xlu0 %1499
        %vm1501 = vcmp.lt.s32.totalorder %v1486, 127
        %v1502 = vsel %vm1501, %v1498, %v1500
        %v1503 = vsel %vm1501, %v1500, %v1498
        %1504 = vrot.lane.b32.xlu0 %v1484, 127
        %v1505 = vpop.permute.xlu0 %1504
        %v1506 = vsel %vm1488, 1, 0
        %v1507 = vsel %vm1489, 1, 0
        %vm1508 = vcmp.eq.s32.totalorder %v1506, 1
        %vm1509 = vcmp.eq.s32.totalorder %v1507, 1
        %v1510 = vsel %vm1508, %v1502, %v1505
        %v1511 = vsel %vm1509, %v1503, %v1505
        %1512 = vrot.lane.b32.xlu0 %v1483, 126
        %v1513 = vpop.permute.xlu0 %1512
        %1514 = vrot.lane.b32.xlu0 %v1495, 126
        %v1515 = vpop.permute.xlu0 %1514
        %vm1516 = vcmp.lt.s32.totalorder %v1486, 126
        %v1517 = vsel %vm1516, %v1513, %v1515
        %v1518 = vsel %vm1516, %v1515, %v1513
        %1519 = vrot.lane.b32.xlu0 %v1484, 126
        %v1520 = vpop.permute.xlu0 %1519
        %v1521 = vsel %vm1490, 1, 0
        %v1522 = vsel %vm1491, 1, 0
        %vm1523 = vcmp.eq.s32.totalorder %v1521, 1
        %vm1524 = vcmp.eq.s32.totalorder %v1522, 1
        %v1525 = vsel %vm1523, %v1517, %v1520
        %v1526 = vsel %vm1524, %v1518, %v1520
        %1527 = vrot.lane.b32.xlu0 %v1483, 125
        %v1528 = vpop.permute.xlu0 %1527
        %1529 = vrot.lane.b32.xlu0 %v1495, 125
        %v1530 = vpop.permute.xlu0 %1529
        %vm1531 = vcmp.lt.s32.totalorder %v1486, 125
        %v1532 = vsel %vm1531, %v1528, %v1530
        %v1533 = vsel %vm1531, %v1530, %v1528
        %1534 = vrot.lane.b32.xlu0 %v1484, 125
        %v1535 = vpop.permute.xlu0 %1534
        %v1536 = vsel %vm1492, 1, 0
        %v1537 = vsel %vm1493, 1, 0
        %vm1538 = vcmp.eq.s32.totalorder %v1536, 1
        %vm1539 = vcmp.eq.s32.totalorder %v1537, 1
        %v1540 = vsel %vm1538, %v1532, %v1535
        %v1541 = vsel %vm1539, %v1533, %v1535
        %1542 = vrot.lane.b32.xlu0 %v1307, 127
        %v1543 = vpop.permute.xlu0 %1542
        %1544 = vrot.lane.b32.xlu0 %v1308, 127
        %v1545 = vpop.permute.xlu0 %1544
        %v1546 = vsel %vm1501, %v1543, %v1545
        %v1547 = vsel %vm1501, %v1545, %v1543
        %1548 = vrot.lane.b32.xlu0 %v1482, 127
        %v1549 = vpop.permute.xlu0 %1548
        %v1550 = vsel %vm1488, %v1546, %v1549
        %v1551 = vsel %vm1489, %v1547, %v1549
        %1552 = vrot.lane.b32.xlu0 %v1307, 126
        %v1553 = vpop.permute.xlu0 %1552
        %1554 = vrot.lane.b32.xlu0 %v1308, 126
        %v1555 = vpop.permute.xlu0 %1554
        %v1556 = vsel %vm1516, %v1553, %v1555
        %v1557 = vsel %vm1516, %v1555, %v1553
        %1558 = vrot.lane.b32.xlu0 %v1482, 126
        %v1559 = vpop.permute.xlu0 %1558
        %v1560 = vsel %vm1490, %v1556, %v1559
        %v1561 = vsel %vm1491, %v1557, %v1559
        %s1562 = sld [smem:[#allocation2 + $0x1]]
        %s1563 = sld [smem:[#allocation2 + $0x2]]
        %s1564 = sld [smem:[#allocation2 + $0x3]]
        %s1565 = sld [smem:[#allocation2 + $0x4]]
        %s1566 = sld [smem:[#allocation2 + $0x5]]
        %s1567 = sld [smem:[#allocation2 + $0x6]]
        %v1568 = vstv %s1567
        %v1569 = vmul.f32 %v1568, %v1483
        %v1570 = vstv %s1564
        %v1571 = vmul.f32 %v1570, %v1510
        %v1572 = vmul.f32 %v1570, %v1511
        %v1575 = vcombine.low %v1571, %v1572
        %v1577 = vsub.f32 %v1569, %v1575
        %v1579 = vcombine.high %v1577, %v1577
        %v1581 = vmul.f32 %v1307, %v1577
        %v1582 = vmul.f32 %v1308, %v1579
        %v1583 = vmul.f32 %v1568, %v1510
        %v1584 = vmul.f32 %v1568, %v1511
        %v1585 = vmul.f32 %v1570, %v1525
        %v1586 = vmul.f32 %v1570, %v1526
        %v1587 = vsub.f32 %v1583, %v1585
        %v1588 = vsub.f32 %v1584, %v1586
        %v1589 = vlaneseq
        %v1590 = vshrl.u32 %v1589, 7
        %v1591 = vsub.s32 0, %v1590
        %v1592 = vrot.slane %v1550, %v1591
        %v1593 = vlaneseq
        %v1594 = vshrl.u32 %v1593, 7
        %v1595 = vsub.s32 0, %v1594
        %v1596 = vrot.slane %v1551, %v1595
        %v1597 = vmul.f32 %v1592, %v1587
        %v1598 = vmul.f32 %v1596, %v1588
        %v1599 = vmul.f32 %v1568, %v1525
        %v1600 = vmul.f32 %v1568, %v1526
        %v1601 = vmul.f32 %v1570, %v1540
        %v1602 = vmul.f32 %v1570, %v1541
        %v1603 = vsub.f32 %v1599, %v1601
        %v1604 = vsub.f32 %v1600, %v1602
        %v1605 = vlaneseq
        %v1606 = vshrl.u32 %v1605, 7
        %v1607 = vsub.s32 0, %v1606
        %v1608 = vrot.slane %v1560, %v1607
        %v1609 = vlaneseq
        %v1610 = vshrl.u32 %v1609, 7
        %v1611 = vsub.s32 0, %v1610
        %v1612 = vrot.slane %v1561, %v1611
        %v1613 = vmul.f32 %v1608, %v1603
        %v1614 = vmul.f32 %v1612, %v1604
        %v1615 = vsub.f32 %v1510, %v1597
        %v1616 = vsub.f32 %v1511, %v1598
        %v1617 = vstv %s1565
        %v1618 = vmul.f32 %v1617, %v1615
        %v1619 = vmul.f32 %v1617, %v1616
        %v1620 = vstv %s1562
        %v1621 = vmul.f32 %v1620, %v1581
        %v1622 = vmul.f32 %v1620, %v1582
        %v1623 = vadd.f32 %v1618, %v1621
        %v1624 = vadd.f32 %v1619, %v1622
        %v1625 = vmul.f32 %v1307, %v1623
        %v1626 = vmul.f32 %v1308, %v1624
        %v1627 = vsub.f32 %v1525, %v1613
        %v1628 = vsub.f32 %v1526, %v1614
        %v1629 = vmul.f32 %v1617, %v1627
        %v1630 = vmul.f32 %v1617, %v1628
        %v1631 = vmul.f32 %v1620, %v1597
        %v1632 = vmul.f32 %v1620, %v1598
        %v1633 = vadd.f32 %v1629, %v1631
        %v1634 = vadd.f32 %v1630, %v1632
        %v1635 = vmul.f32 %v1592, %v1633
        %v1636 = vmul.f32 %v1596, %v1634
        %v1637 = vsub.f32 %v1525, %v1635
        %v1638 = vsub.f32 %v1526, %v1636
        %v1639 = vstv %s1566
        %v1640 = vmul.f32 %v1639, %v1637
        %v1641 = vmul.f32 %v1639, %v1638
        %v1642 = vstv %s1563
        %v1643 = vmul.f32 %v1642, %v1625
        %v1644 = vmul.f32 %v1642, %v1626
        %v1645 = vadd.f32 %v1640, %v1643
        %v1646 = vadd.f32 %v1641, %v1644
        %v1647 = vmul.f32 %v1307, %v1645
        %v1648 = vmul.f32 %v1308, %v1646
        %v1651 = vcombine.low %v1647, %v1648
        %1653 = vst [vmem:[%s437] sm:$0xff] %v1651
        %s1654 = sand.u32 %s231, 1
        %s1655 = scalar_lea.sflag [#allocation3], %s1654
        %s1656 = sand.u32 %s231, 1
        %s1657 = smul.addr %s1656, 8
        %s1658 = scalar_lea.vmem [#allocation5], %s1657
        // Predicated region
        $region49: #{time_dependent_allpass.1} parent=43 // pred_check
          %p1659 = pneg %p241
        $region50: #{time_dependent_allpass.1} parent=43 // pred_check_branch
          %1661 = sbr.rel (%p1659) target = $region52
        $region51: #{time_dependent_allpass.1} parent=43 // pred_region
          %s1662 = smul.u32 2, %s21
          %s1664 = ssub.s32 128, 128
          %1665 = vsyncadd %s1655, %s1664
          %s1666 = smul.addr %s1662, 64
          %s1667 = scalar_lea.hbm %s6, %s1666
          %s1669 = sshll.u32 %s1658, 4
          %s1670 = int_to_ptr.vmem [resolvable:$true] %s1669
          %1672 = dma.vmem_to_hbm [thread:$0]  %s1670, 128, %s1667, %s1655
        $region52: #{time_dependent_allpass.1} parent=43 // pred_fallthru
          _
      $region44: #{time_dependent_allpass.1} parent=5 // pred_fallthru
        _
      %p1673 = scmp.le.s32.totalorder 2, %s16
      // Predicated region
      $region53: #{time_dependent_allpass.1} parent=5 // pred_check
        %p1674 = pneg %p1673
      $region54: #{time_dependent_allpass.1} parent=5 // pred_check_branch
        %1676 = sbr.rel (%p1674) target = $region56
      $region55: #{time_dependent_allpass.1} parent=5 // pred_region
        %s1677 = ssub.s32 %s16, 2
        // Predicated region
        $region57: #{time_dependent_allpass.1} parent=55 // pred_check
          %p1678 = pneg %p247
        $region58: #{time_dependent_allpass.1} parent=55 // pred_check_branch
          %1680 = sbr.rel (%p1678) target = $region60
        $region59: #{time_dependent_allpass.1} parent=55 // pred_region
          %s1681 = sand.u32 %s232, 1
          %s1682 = scalar_lea.sflag [#allocation3], %s1681
          %s1683 = sand.u32 %s232, 1
          %s1684 = smul.addr %s1683, 8
          %s1685 = scalar_lea.vmem [#allocation5], %s1684
          %1686 = dma.done %s1682, 128
        $region60: #{time_dependent_allpass.1} parent=55 // pred_fallthru
          _
      $region56: #{time_dependent_allpass.1} parent=5 // pred_fallthru
        _
    $region6: #{time_dependent_allpass.1} parent=1 // loop_footer
      %s20 = sadd.s32 1, %s16
    $region7: #{time_dependent_allpass.1} parent=1 // loop_footer_branch
      %15 = sbr.rel target = $region3
    $region8: #{time_dependent_allpass.1} parent=1 // loop_exit
      _
    %1687 = vsyncpa [#allocation3], 1
    %s1688 = scalar_lea.sflag [#allocation3], 1
    %1689 = vsyncpa %s1688, 1
    %1690 = vsyncpa [#allocation4], 1
    %s1691 = scalar_lea.sflag [#allocation4], 1
    %1692 = vsyncpa %s1691, 1

</llo_original>
